<compile_context>
chip_gen: v7x
topology: tpu7x:2x2x1
jax: 0.10.0
libtpu: 0.0.40
codegen_flags: <defaults>
</compile_context>

<pallas_src>
import functools
import math
from collections import namedtuple

import numpy as np
import jax
import jax.numpy as jnp
from jax.experimental import pallas as pl
from jax.experimental.pallas import tpu as pltpu

LANE = 128
MASK_LANE = LANE - 1   # lane 127 of every activation slab carries the row mask


# ------------------------------ fused kernel --------------------------------

def _erf_approx(x):
    # Abramowitz & Stegun 7.1.26 (|err| < 1.5e-7); exp() runs on the EUP slot.
    p = 0.3275911
    a1, a2, a3, a4, a5 = (0.254829592, -0.284496736, 1.421413741,
                          -1.453152027, 1.061405429)
    s = jnp.where(x >= 0.0, 1.0, -1.0)
    ax = jnp.abs(x)
    t = 1.0 / (1.0 + p * ax)
    poly = t * (a1 + t * (a2 + t * (a3 + t * (a4 + t * a5))))
    return s * (1.0 - poly * jnp.exp(-ax * ax))


Instr = namedtuple("Instr", "kind terms pre_relu off k act mask a b")
# kind == "lin": out = [mask*] act( concat_k(roll(pre(slab[src_k]), shift_k)) @ W[off:off+k] )
#                bias + row mask are folded into W via the mask lane (127).
# kind == "add": out = slab[a] + slab[b]


def _fused_forward_kernel(prog, rows, x_ref, mask_ref, w_ref, o_ref):
    """Entire network forward, replayed from a static instruction list."""
    mask_b = mask_ref[...]                  # (rows, LANE) f32, pre-broadcast, hoisted
    slabs = [x_ref[...]]                    # slab 0 = lane-packed input (f32)
    pre_cache = {}                          # (src, relu)        -> f32 slab
    tap_cache = {}                          # (src, relu, shift) -> bf16 rolled tap

    def tap(src, relu, shift):
        key = (src, relu, shift)
        if key not in tap_cache:
            pkey = (src, relu)
            if pkey not in pre_cache:
                v = slabs[src]
                pre_cache[pkey] = jnp.maximum(v, 0.0) if relu else v
            a = pre_cache[pkey]
            sh = shift % rows
            if sh != 0:
                # vertical (H) conv tap: sublane rotation on the XLU; wrap rows
                # are always zero pad rows of whole images, so rolls are exact.
                a = pltpu.roll(a, sh, axis=0)
            tap_cache[key] = a.astype(jnp.bfloat16)
        return tap_cache[key]

    for inst in prog:
        if inst.kind == "add":
            slabs.append(slabs[inst.a] + slabs[inst.b])
            continue
        taps = [tap(src, inst.pre_relu, sh) for (src, sh) in inst.terms]
        xin = taps[0] if len(taps) == 1 else jnp.concatenate(taps, axis=1)
        acc = jnp.dot(xin, w_ref[inst.off:inst.off + inst.k, :],
                      preferred_element_type=jnp.float32)
        if inst.act == "gelu":               # torch.nn.GELU() default (erf form)
            acc = 0.5 * acc * (1.0 + _erf_approx(acc * 0.7071067811865476))
        elif inst.act == "sigmoid":           # exact -> output stays in [0, 1]
            acc = 1.0 / (1.0 + jnp.exp(-acc))
        if inst.mask:                         # only ops with nonzero H-shifts
            acc = acc * mask_b
        slabs.append(acc)
    o_ref[...] = slabs[-1]


# --------------------------- host-side preparation --------------------------

def _bn_fold(bn):
    gamma, beta, mean, var = (np.asarray(t, np.float64) for t in bn)
    scale = gamma / np.sqrt(var + 1e-5)
    shift = beta - mean * scale
    return scale, shift


def _conv_tap_mats(w_oihw, scale, w_in, sw, pw):
    """Per-H-tap lane-packed matrices for a conv with BN scale folded in."""
    w = np.asarray(w_oihw, np.float64)
    c_out, c_in, kh, kw = w.shape
    w_out = (w_in + 2 * pw - kw) // sw + 1
    w_s = w * np.asarray(scale, np.float64)[:, None, None, None]
    wi = np.arange(w_in)[:, None, None]
    dj = np.arange(kw)[None, :, None]
    wo = np.arange(w_out)[None, None, :]
    place = (wi == wo * sw + dj - pw).astype(np.float64)    # (w_in, kw, w_out)
    mats = []
    for di in range(kh):
        m4 = np.einsum("wdv,ocd->wcvo", place, w_s[:, :, di, :])
        mats.append(m4.reshape(w_in * c_in, w_out * c_out))
    return mats, w_out, (kh - 1) // 2


def _factored_reduce_mat(w_oihw, scale, w_in, pool):
    """AvgPool(1, pool) o 1x1 Conv o BN-scale composed into one matrix."""
    w = np.asarray(w_oihw, np.float64)
    c_out, c_in = w.shape[0], w.shape[1]
    w_out = w_in // pool
    w_s = w[:, :, 0, 0] * np.asarray(scale, np.float64)[:, None]
    wi = np.arange(w_in)[:, None]
    wo = np.arange(w_out)[None, :]
    ppool = ((wi // pool) == wo).astype(np.float64) / float(pool)
    m4 = np.einsum("wv,oc->wcvo", ppool, w_s)
    return m4.reshape(w_in * c_in, w_out * c_out), w_out


def _gelu1():
    return 0.5 * (1.0 + math.erf(1.0 / math.sqrt(2.0)))


def _pick_imgs_per_block(n, hp, target_rows=1024):
    best = 1
    for d in range(1, n + 1):
        if n % d == 0 and d * hp <= target_rows:
            best = d
    if n // best < 2:          # prefer >=2 grid blocks (v7x megacore) if possible
        for d in range(best, 0, -1):
            if n % d == 0 and n // d >= 2:
                best = d
                break
    return best


def prepare(params, n, h, w_in):
    """Fold BN, compose pool/conv/concat/mean/classifier (+ bias and mask
    routing) into one lane-packed weight matrix per op, choose the row tiling,
    and build the static instruction list the kernel replays."""
    hp = ((h + 2 + 7) // 8) * 8            # per-image padded height, 8-aligned
    bimgs = _pick_imgs_per_block(n, hp)
    block_rows = bimgs * hp
    nblocks = n // bimgs

    wblocks, prog = [], []
    nslab = [1]                            # slab 0 = network input
    mscale = {0: 1.0}                      # slab -> mask-lane value on real rows

    def emit_lin(terms, pre_relu=False, bias=None, act="none"):
        # terms: list of (src_slab, h_shift, mat[r_in, c_out]) numpy matrices
        masked = any(sh != 0 for (_, sh, _) in terms)
        route = next(i for i, (_, sh, _) in enumerate(terms) if sh == 0)
        off = LANE * len(wblocks)
        for i, (src, sh, m) in enumerate(terms):
            m = np.asarray(m, np.float64)
            r, c = m.shape
            assert r <= MASK_LANE and c <= MASK_LANE, "W*C must stay below lane 127"
            blk = np.zeros((LANE, LANE), np.float64)
            blk[:r, :c] = m
            if i == route:
                coeff = 1.0 / mscale[src]
                if bias is not None:
                    blk[MASK_LANE, :c] = np.asarray(bias, np.float64) * coeff
                blk[MASK_LANE, MASK_LANE] = coeff     # propagate row mask
            wblocks.append(blk)
        sid = nslab[0]; nslab[0] += 1
        prog.append(Instr("lin", tuple((s, sh) for (s, sh, _) in terms),
                          pre_relu, off, LANE * len(terms), act, masked, -1, -1))
        mscale[sid] = {"none": 1.0, "gelu": _gelu1(),
                       "sigmoid": 1.0 / (1.0 + math.exp(-1.0))}[act]
        return sid

    def emit_add(a, b):
        sid = nslab[0]; nslab[0] += 1
        prog.append(Instr("add", (), False, 0, 0, "none", False, a, b))
        mscale[sid] = mscale[a] + mscale[b]
        return sid

    # --- stem: Conv(1->C,3x3,stride(1,2)) -> BN -> GELU -> Conv(C->C,3x3) ---
    st = params["stem"]
    sc0, sh0 = _bn_fold(st["bn0"])
    taps, w_cur, ph = _conv_tap_mats(st["w0"], sc0, w_in, sw=2, pw=1)
    s_mid = emit_lin([(0, ph - di, m) for di, m in enumerate(taps)],
                     bias=np.tile(sh0, w_cur), act="gelu")

    c_stem = st["w1"].shape[0]
    taps, w_cur, ph = _conv_tap_mats(st["w1"], np.ones(c_stem), w_cur, sw=1, pw=1)
    s_stem = emit_lin([(s_mid, ph - di, m) for di, m in enumerate(taps)])

    # Cell outputs are kept un-concatenated (list of component slabs); the
    # channel concat is folded into every consumer's matrix instead.
    s0 = {"comps": [s_stem], "c": c_stem, "w": w_cur}
    s1 = {"comps": [s_stem], "c": c_stem, "w": w_cur}

    def fact_reduce(state, pr):
        pool = pr["pool"][1]
        sc, sh = _bn_fold(pr["bn"])
        wfull = np.asarray(pr["w"], np.float64)
        terms, w_out = [], None
        for q, slab in enumerate(state["comps"]):
            wq = wfull[:, q * state["c"]:(q + 1) * state["c"], :, :]
            m, w_out = _factored_reduce_mat(wq, sc, state["w"], pool)
            terms.append((slab, 0, m))
        out = emit_lin(terms, bias=np.tile(sh, w_out))
        return {"comps": [out], "c": pr["w"].shape[0], "w": w_out}

    def apply_op(name, state, op):
        # TODO(synk): OPS dict not in the provided source; DARTS ReLU-Conv-BN.
        if name == "skip_connect":
            return state
        sc, sh = _bn_fold(op["bn"])
        kw = op["w"].shape[3]
        taps, w_out, ph = _conv_tap_mats(op["w"], sc, state["w"], sw=1,
                                         pw=(kw - 1) // 2)
        out = emit_lin([(state["comps"][0], ph - di, m)
                        for di, m in enumerate(taps)],
                       pre_relu=True, bias=np.tile(sh, w_out))
        return {"comps": [out], "c": op["w"].shape[0], "w": w_out}

    for cell in params["cells"]:
        s0p = fact_reduce(s0, cell["pre0"])
        s1p = fact_reduce(s1, cell["pre1"])
        states = [s0p, s1p]
        names, indices = cell["op_names"], cell["indices"]
        for i in range(len(names) // 2):
            h1 = apply_op(names[2 * i], states[indices[2 * i]], cell["ops"][2 * i])
            h2 = apply_op(names[2 * i + 1], states[indices[2 * i + 1]],
                          cell["ops"][2 * i + 1])
            # drop_path is identity (eval / drop_path_prob = 0.0)
            s_new = emit_add(h1["comps"][0], h2["comps"][0])
            states.append({"comps": [s_new], "c": s0p["c"], "w": s0p["w"]})
        out_comps = []
        for idx in cell["concat"]:
            out_comps.extend(states[idx]["comps"])
        s0, s1 = s1, {"comps": out_comps, "c": s0p["c"], "w": s0p["w"]}

    # --- tail: mean over W + Linear(C_total->1) + sigmoid, all one matmul ---
    cls = params["classifier"]
    wcls = np.asarray(cls["w"], np.float64)
    terms = []
    for q, slab in enumerate(s1["comps"]):
        wq = wcls[0, q * s1["c"]:(q + 1) * s1["c"]]
        terms.append((slab, 0, (np.tile(wq, s1["w"]) / float(s1["w"]))[:, None]))
    emit_lin(terms, bias=np.asarray(cls["b"], np.float64), act="sigmoid")

    hh = np.arange(block_rows) % hp
    mrow = ((hh >= 1) & (hh <= h)).astype(np.float32)
    mask_block = np.ascontiguousarray(
        np.broadcast_to(mrow[:, None], (block_rows, LANE)))

    return {
        "wmat": jnp.asarray(np.concatenate(wblocks, axis=0), jnp.bfloat16),
        "mask": jnp.asarray(mask_block),                 # (block_rows, 128) f32
        "prog": tuple(prog),
        "hp": hp, "h": h,
        "block_rows": block_rows, "nblocks": nblocks, "bimgs": bimgs,
    }


# ------------------------------ network spec --------------------------------

Genotype = namedtuple("Genotype", "normal normal_concat reduce reduce_concat")
GENOTYPE = Genotype(
    normal=[("skip_connect", 0), ("conv_3x3", 1),
            ("conv_1x1", 0), ("skip_connect", 2)],
    normal_concat=[2, 3],
    reduce=[("skip_connect", 0), ("conv_3x3", 1),
            ("conv_1x1", 0), ("skip_connect", 2)],
    reduce_concat=[2, 3],
)


def init_params(key, C, layers, genotype):
    keys = iter(jax.random.split(key, 256))

    def conv_w(cout, cin, kh, kw):
        return (jax.random.normal(next(keys), (cout, cin, kh, kw), jnp.float32)
                * (1.0 / jnp.sqrt(cin * kh * kw)))

    def bn(c):
        return (jnp.ones((c,), jnp.float32), jnp.zeros((c,), jnp.float32),
                jnp.zeros((c,), jnp.float32), jnp.ones((c,), jnp.float32))

    params = {"stem": {"w0": conv_w(C, 1, 3, 3), "bn0": bn(C),
                       "w1": conv_w(C, C, 3, 3)}}

    op_names, indices = zip(*genotype.normal)   # use_second=False -> normal only
    concat = list(genotype.normal_concat)
    multiplier = len(concat)

    C_pp, C_p, C_cur = C, C, C
    reduction_list = [layers // 2]
    reduction_prev = False
    cells = []
    for i in range(layers):
        reduction = i in reduction_list
        pool0 = (1, (1 + int(reduction_prev)) * (1 + int(reduction)))
        pool1 = (1, 1 + int(reduction))
        cell = {
            "pre0": {"w": conv_w(C_cur, C_pp, 1, 1), "bn": bn(C_cur), "pool": pool0},
            "pre1": {"w": conv_w(C_cur, C_p, 1, 1), "bn": bn(C_cur), "pool": pool1},
            "ops": [], "op_names": op_names, "indices": indices, "concat": concat,
        }
        for name in op_names:
            if name == "skip_connect":
                cell["ops"].append(None)
            elif name == "conv_3x3":
                cell["ops"].append({"w": conv_w(C_cur, C_cur, 3, 3), "bn": bn(C_cur)})
            elif name == "conv_1x1":
                cell["ops"].append({"w": conv_w(C_cur, C_cur, 1, 1), "bn": bn(C_cur)})
        cells.append(cell)
        reduction_prev = reduction
        C_pp, C_p = C_p, multiplier * C_cur
    params["cells"] = cells
    params["classifier"] = {
        "w": jax.random.normal(next(keys), (1, C_p), jnp.float32)
             * (1.0 / jnp.sqrt(C_p)),
        "b": jnp.zeros((1,), jnp.float32),
    }
    return params


# ------------------------------ forward wrapper -----------------------------

def network_forward(prepared, x_nchw):
    n, cin, h, w_in = x_nchw.shape
    hp, block_rows = prepared["hp"], prepared["block_rows"]
    nblocks = prepared["nblocks"]
    rows = n * hp
    assert rows == nblocks * block_rows

    # NCHW -> lane-packed slab: row = n*hp + 1 + h_idx, lane = w*Cin + c;
    # lane 127 carries the row mask (1 on real rows).
    x = jnp.transpose(x_nchw, (0, 2, 3, 1)).astype(jnp.float32)
    l0 = w_in * cin
    slab = jnp.zeros((n, hp, LANE), jnp.float32)
    slab = slab.at[:, 1:1 + h, :l0].set(x.reshape(n, h, l0))
    slab = slab.at[:, 1:1 + h, MASK_LANE].set(1.0)
    slab = slab.reshape(rows, LANE)

    total_k = prepared["wmat"].shape[0]

    out = pl.pallas_call(
        functools.partial(_fused_forward_kernel, prepared["prog"], block_rows),
        out_shape=jax.ShapeDtypeStruct((rows, LANE), jnp.float32),
        grid=(nblocks,),
        in_specs=[
            pl.BlockSpec((block_rows, LANE), lambda i: (i, 0)),   # input slab
            pl.BlockSpec((block_rows, LANE), lambda i: (0, 0)),   # row mask (resident)
            pl.BlockSpec((total_k, LANE), lambda i: (0, 0)),      # weights (resident)
        ],
        out_specs=pl.BlockSpec((block_rows, LANE), lambda i: (i, 0)),
        compiler_params=pltpu.CompilerParams(
            dimension_semantics=("parallel",)),
    )(slab, prepared["mask"], prepared["wmat"])

    # logits live in lane 0 of the real rows
    logits = out[:, 0].reshape(n, hp)[:, 1:1 + h]   # (N, H)
    return logits


if __name__ == "__main__":
    key = jax.random.PRNGKey(0)
    kp, kx = jax.random.split(key)
    C, layers = 8, 2
    params = init_params(kp, C, layers, GENOTYPE)
    x = jax.random.normal(kx, (2, 1, 16, 16), jnp.float32)  # (N, 1, time, freq)

    prepared = prepare(params, n=2, h=16, w_in=16)          # one-time host prep
    fwd = jax.jit(functools.partial(network_forward, prepared))
    out = jax.block_until_ready(fwd(x))

    assert out.shape == (2, 16), out.shape
    assert bool(jnp.all(jnp.isfinite(out)))
    assert bool(jnp.all((out >= 0.0) & (out <= 1.0)))
    print("KERNEL_OK")
</pallas_src>

<mosaic_0001>
module attributes {stable_mosaic.version = 11 : i64} {
  func.func @_fused_forward_kernel(%arg0: i32, %arg1: memref<24x128xf32, #tpu.memory_space<vmem>>, %arg2: memref<24x128xf32, #tpu.memory_space<vmem>>, %arg3: memref<2688x128xbf16, #tpu.memory_space<vmem>>, %arg4: memref<24x128xf32, #tpu.memory_space<vmem>>) attributes {dimension_semantics = [#tpu.dimension_semantics<parallel>], iteration_bounds = array<i64: 2>, scalar_prefetch = 0 : i64, scratch_operands = 0 : i64, tpu.core_type = #tpu.core_type<tc>, window_params = [{transform_indices = @transform_0, window_bounds = array<i64: 24, 128>}, {pipeline_mode = #tpu.pipeline_mode<synchronous>, transform_indices = @transform_1, window_bounds = array<i64: 24, 128>}, {pipeline_mode = #tpu.pipeline_mode<synchronous>, transform_indices = @transform_2, window_bounds = array<i64: 2688, 128>}, {transform_indices = @transform_3, window_bounds = array<i64: 24, 128>}]} {
    %c0 = arith.constant 0 : index
    %c0_0 = arith.constant 0 : index
    %0 = vector.load %arg2[%c0, %c0_0] : memref<24x128xf32, #tpu.memory_space<vmem>>, vector<24x128xf32>
    %c0_1 = arith.constant 0 : index
    %c0_2 = arith.constant 0 : index
    %1 = vector.load %arg1[%c0_1, %c0_2] : memref<24x128xf32, #tpu.memory_space<vmem>>, vector<24x128xf32>
    %c1_i32 = arith.constant 1 : i32
    %2 = tpu.dynamic_rotate %1 by %c1_i32 dim 0 : vector<24x128xf32>, i32 -> vector<24x128xf32>
    %3 = arith.truncf %2 : vector<24x128xf32> to vector<24x128xbf16>
    %4 = arith.truncf %1 : vector<24x128xf32> to vector<24x128xbf16>
    %c23_i32 = arith.constant 23 : i32
    %5 = tpu.dynamic_rotate %1 by %c23_i32 dim 0 : vector<24x128xf32>, i32 -> vector<24x128xf32>
    %6 = arith.truncf %5 : vector<24x128xf32> to vector<24x128xbf16>
    %7 = tpu.concatenate %3, %4, %6 in 1 : vector<24x128xbf16>, vector<24x128xbf16>, vector<24x128xbf16> -> vector<24x384xbf16>
    %c0_3 = arith.constant 0 : index
    %c0_4 = arith.constant 0 : index
    %8 = vector.load %arg3[%c0_3, %c0_4] : memref<2688x128xbf16, #tpu.memory_space<vmem>>, vector<384x128xbf16>
    %cst = arith.constant dense<0.000000e+00> : vector<24x128xf32>
    %9 = tpu.matmul %7, %8, %cst {dimension_numbers = #tpu.dot_dimension_numbers<[1], [0], [0], [1], [0, 0, 1, 1], [], []>} : vector<24x384xbf16>, vector<384x128xbf16>, vector<24x128xf32> -> vector<24x128xf32>
    %cst_5 = arith.constant 5.000000e-01 : f32
    %10 = vector.broadcast %cst_5 : f32 to vector<24x128xf32>
    %11 = arith.mulf %10, %9 : vector<24x128xf32>
    %cst_6 = arith.constant 0.707106769 : f32
    %12 = vector.broadcast %cst_6 : f32 to vector<24x128xf32>
    %13 = arith.mulf %9, %12 : vector<24x128xf32>
    %cst_7 = arith.constant 0.000000e+00 : f32
    %14 = vector.broadcast %cst_7 : f32 to vector<24x128xf32>
    %15 = arith.cmpf oge, %13, %14 : vector<24x128xf32>
    %cst_8 = arith.constant 1.000000e+00 : f32
    %cst_9 = arith.constant -1.000000e+00 : f32
    %16 = vector.broadcast %cst_8 : f32 to vector<24x128xf32>
    %17 = vector.broadcast %cst_9 : f32 to vector<24x128xf32>
    %18 = arith.select %15, %16, %17 : vector<24x128xi1>, vector<24x128xf32>
    %19 = math.absf %13 : vector<24x128xf32>
    %cst_10 = arith.constant 0.327591091 : f32
    %20 = vector.broadcast %cst_10 : f32 to vector<24x128xf32>
    %21 = arith.mulf %20, %19 : vector<24x128xf32>
    %cst_11 = arith.constant 1.000000e+00 : f32
    %22 = vector.broadcast %cst_11 : f32 to vector<24x128xf32>
    %23 = arith.addf %22, %21 : vector<24x128xf32>
    %cst_12 = arith.constant 1.000000e+00 : f32
    %24 = vector.broadcast %cst_12 : f32 to vector<24x128xf32>
    %25 = arith.divf %24, %23 : vector<24x128xf32>
    %cst_13 = arith.constant 1.06140542 : f32
    %26 = vector.broadcast %cst_13 : f32 to vector<24x128xf32>
    %27 = arith.mulf %25, %26 : vector<24x128xf32>
    %cst_14 = arith.constant -1.45315206 : f32
    %28 = vector.broadcast %cst_14 : f32 to vector<24x128xf32>
    %29 = arith.addf %28, %27 : vector<24x128xf32>
    %30 = arith.mulf %25, %29 : vector<24x128xf32>
    %cst_15 = arith.constant 1.42141378 : f32
    %31 = vector.broadcast %cst_15 : f32 to vector<24x128xf32>
    %32 = arith.addf %31, %30 : vector<24x128xf32>
    %33 = arith.mulf %25, %32 : vector<24x128xf32>
    %cst_16 = arith.constant -0.284496725 : f32
    %34 = vector.broadcast %cst_16 : f32 to vector<24x128xf32>
    %35 = arith.addf %34, %33 : vector<24x128xf32>
    %36 = arith.mulf %25, %35 : vector<24x128xf32>
    %cst_17 = arith.constant 0.254829586 : f32
    %37 = vector.broadcast %cst_17 : f32 to vector<24x128xf32>
    %38 = arith.addf %37, %36 : vector<24x128xf32>
    %39 = arith.mulf %25, %38 : vector<24x128xf32>
    %cst_18 = arith.constant 0.000000e+00 : f32
    %40 = vector.broadcast %cst_18 : f32 to vector<24x128xf32>
    %41 = arith.subf %40, %19 : vector<24x128xf32>
    %42 = arith.mulf %41, %19 : vector<24x128xf32>
    %43 = math.exp %42 : vector<24x128xf32>
    %44 = arith.mulf %39, %43 : vector<24x128xf32>
    %cst_19 = arith.constant 1.000000e+00 : f32
    %45 = vector.broadcast %cst_19 : f32 to vector<24x128xf32>
    %46 = arith.subf %45, %44 : vector<24x128xf32>
    %47 = arith.mulf %18, %46 : vector<24x128xf32>
    %cst_20 = arith.constant 1.000000e+00 : f32
    %48 = vector.broadcast %cst_20 : f32 to vector<24x128xf32>
    %49 = arith.addf %48, %47 : vector<24x128xf32>
    %50 = arith.mulf %11, %49 : vector<24x128xf32>
    %51 = arith.mulf %50, %0 : vector<24x128xf32>
    %c1_i32_21 = arith.constant 1 : i32
    %52 = tpu.dynamic_rotate %51 by %c1_i32_21 dim 0 : vector<24x128xf32>, i32 -> vector<24x128xf32>
    %53 = arith.truncf %52 : vector<24x128xf32> to vector<24x128xbf16>
    %54 = arith.truncf %51 : vector<24x128xf32> to vector<24x128xbf16>
    %c23_i32_22 = arith.constant 23 : i32
    %55 = tpu.dynamic_rotate %51 by %c23_i32_22 dim 0 : vector<24x128xf32>, i32 -> vector<24x128xf32>
    %56 = arith.truncf %55 : vector<24x128xf32> to vector<24x128xbf16>
    %57 = tpu.concatenate %53, %54, %56 in 1 : vector<24x128xbf16>, vector<24x128xbf16>, vector<24x128xbf16> -> vector<24x384xbf16>
    %c384 = arith.constant 384 : index
    %c0_23 = arith.constant 0 : index
    %58 = vector.load %arg3[%c384, %c0_23] : memref<2688x128xbf16, #tpu.memory_space<vmem>>, vector<384x128xbf16>
    %cst_24 = arith.constant dense<0.000000e+00> : vector<24x128xf32>
    %59 = tpu.matmul %57, %58, %cst_24 {dimension_numbers = #tpu.dot_dimension_numbers<[1], [0], [0], [1], [0, 0, 1, 1], [], []>} : vector<24x384xbf16>, vector<384x128xbf16>, vector<24x128xf32> -> vector<24x128xf32>
    %60 = arith.mulf %59, %0 : vector<24x128xf32>
    %61 = arith.truncf %60 : vector<24x128xf32> to vector<24x128xbf16>
    %c768 = arith.constant 768 : index
    %c0_25 = arith.constant 0 : index
    %62 = vector.load %arg3[%c768, %c0_25] : memref<2688x128xbf16, #tpu.memory_space<vmem>>, vector<128x128xbf16>
    %cst_26 = arith.constant dense<0.000000e+00> : vector<24x128xf32>
    %63 = tpu.matmul %61, %62, %cst_26 {dimension_numbers = #tpu.dot_dimension_numbers<[1], [0], [0], [1], [0, 0, 1, 1], [], []>} : vector<24x128xbf16>, vector<128x128xbf16>, vector<24x128xf32> -> vector<24x128xf32>
    %c896 = arith.constant 896 : index
    %c0_27 = arith.constant 0 : index
    %64 = vector.load %arg3[%c896, %c0_27] : memref<2688x128xbf16, #tpu.memory_space<vmem>>, vector<128x128xbf16>
    %cst_28 = arith.constant dense<0.000000e+00> : vector<24x128xf32>
    %65 = tpu.matmul %61, %64, %cst_28 {dimension_numbers = #tpu.dot_dimension_numbers<[1], [0], [0], [1], [0, 0, 1, 1], [], []>} : vector<24x128xbf16>, vector<128x128xbf16>, vector<24x128xf32> -> vector<24x128xf32>
    %cst_29 = arith.constant 0.000000e+00 : f32
    %66 = vector.broadcast %cst_29 : f32 to vector<24x128xf32>
    %67 = arith.maximumf %65, %66 : vector<24x128xf32>
    %c1_i32_30 = arith.constant 1 : i32
    %68 = tpu.dynamic_rotate %67 by %c1_i32_30 dim 0 : vector<24x128xf32>, i32 -> vector<24x128xf32>
    %69 = arith.truncf %68 : vector<24x128xf32> to vector<24x128xbf16>
    %70 = arith.truncf %67 : vector<24x128xf32> to vector<24x128xbf16>
    %c23_i32_31 = arith.constant 23 : i32
    %71 = tpu.dynamic_rotate %67 by %c23_i32_31 dim 0 : vector<24x128xf32>, i32 -> vector<24x128xf32>
    %72 = arith.truncf %71 : vector<24x128xf32> to vector<24x128xbf16>
    %73 = tpu.concatenate %69, %70, %72 in 1 : vector<24x128xbf16>, vector<24x128xbf16>, vector<24x128xbf16> -> vector<24x384xbf16>
    %c1024 = arith.constant 1024 : index
    %c0_32 = arith.constant 0 : index
    %74 = vector.load %arg3[%c1024, %c0_32] : memref<2688x128xbf16, #tpu.memory_space<vmem>>, vector<384x128xbf16>
    %cst_33 = arith.constant dense<0.000000e+00> : vector<24x128xf32>
    %75 = tpu.matmul %73, %74, %cst_33 {dimension_numbers = #tpu.dot_dimension_numbers<[1], [0], [0], [1], [0, 0, 1, 1], [], []>} : vector<24x384xbf16>, vector<384x128xbf16>, vector<24x128xf32> -> vector<24x128xf32>
    %76 = arith.mulf %75, %0 : vector<24x128xf32>
    %77 = arith.addf %63, %76 : vector<24x128xf32>
    %cst_34 = arith.constant 0.000000e+00 : f32
    %78 = vector.broadcast %cst_34 : f32 to vector<24x128xf32>
    %79 = arith.maximumf %63, %78 : vector<24x128xf32>
    %80 = arith.truncf %79 : vector<24x128xf32> to vector<24x128xbf16>
    %c1408 = arith.constant 1408 : index
    %c0_35 = arith.constant 0 : index
    %81 = vector.load %arg3[%c1408, %c0_35] : memref<2688x128xbf16, #tpu.memory_space<vmem>>, vector<128x128xbf16>
    %cst_36 = arith.constant dense<0.000000e+00> : vector<24x128xf32>
    %82 = tpu.matmul %80, %81, %cst_36 {dimension_numbers = #tpu.dot_dimension_numbers<[1], [0], [0], [1], [0, 0, 1, 1], [], []>} : vector<24x128xbf16>, vector<128x128xbf16>, vector<24x128xf32> -> vector<24x128xf32>
    %83 = arith.addf %82, %77 : vector<24x128xf32>
    %c1536 = arith.constant 1536 : index
    %c0_37 = arith.constant 0 : index
    %84 = vector.load %arg3[%c1536, %c0_37] : memref<2688x128xbf16, #tpu.memory_space<vmem>>, vector<128x128xbf16>
    %cst_38 = arith.constant dense<0.000000e+00> : vector<24x128xf32>
    %85 = tpu.matmul %61, %84, %cst_38 {dimension_numbers = #tpu.dot_dimension_numbers<[1], [0], [0], [1], [0, 0, 1, 1], [], []>} : vector<24x128xbf16>, vector<128x128xbf16>, vector<24x128xf32> -> vector<24x128xf32>
    %86 = arith.truncf %77 : vector<24x128xf32> to vector<24x128xbf16>
    %87 = arith.truncf %83 : vector<24x128xf32> to vector<24x128xbf16>
    %88 = tpu.concatenate %86, %87 in 1 : vector<24x128xbf16>, vector<24x128xbf16> -> vector<24x256xbf16>
    %c1664 = arith.constant 1664 : index
    %c0_39 = arith.constant 0 : index
    %89 = vector.load %arg3[%c1664, %c0_39] : memref<2688x128xbf16, #tpu.memory_space<vmem>>, vector<256x128xbf16>
    %cst_40 = arith.constant dense<0.000000e+00> : vector<24x128xf32>
    %90 = tpu.matmul %88, %89, %cst_40 {dimension_numbers = #tpu.dot_dimension_numbers<[1], [0], [0], [1], [0, 0, 1, 1], [], []>} : vector<24x256xbf16>, vector<256x128xbf16>, vector<24x128xf32> -> vector<24x128xf32>
    %cst_41 = arith.constant 0.000000e+00 : f32
    %91 = vector.broadcast %cst_41 : f32 to vector<24x128xf32>
    %92 = arith.maximumf %90, %91 : vector<24x128xf32>
    %c1_i32_42 = arith.constant 1 : i32
    %93 = tpu.dynamic_rotate %92 by %c1_i32_42 dim 0 : vector<24x128xf32>, i32 -> vector<24x128xf32>
    %94 = arith.truncf %93 : vector<24x128xf32> to vector<24x128xbf16>
    %95 = arith.truncf %92 : vector<24x128xf32> to vector<24x128xbf16>
    %c23_i32_43 = arith.constant 23 : i32
    %96 = tpu.dynamic_rotate %92 by %c23_i32_43 dim 0 : vector<24x128xf32>, i32 -> vector<24x128xf32>
    %97 = arith.truncf %96 : vector<24x128xf32> to vector<24x128xbf16>
    %98 = tpu.concatenate %94, %95, %97 in 1 : vector<24x128xbf16>, vector<24x128xbf16>, vector<24x128xbf16> -> vector<24x384xbf16>
    %c1920 = arith.constant 1920 : index
    %c0_44 = arith.constant 0 : index
    %99 = vector.load %arg3[%c1920, %c0_44] : memref<2688x128xbf16, #tpu.memory_space<vmem>>, vector<384x128xbf16>
    %cst_45 = arith.constant dense<0.000000e+00> : vector<24x128xf32>
    %100 = tpu.matmul %98, %99, %cst_45 {dimension_numbers = #tpu.dot_dimension_numbers<[1], [0], [0], [1], [0, 0, 1, 1], [], []>} : vector<24x384xbf16>, vector<384x128xbf16>, vector<24x128xf32> -> vector<24x128xf32>
    %101 = arith.mulf %100, %0 : vector<24x128xf32>
    %102 = arith.addf %85, %101 : vector<24x128xf32>
    %cst_46 = arith.constant 0.000000e+00 : f32
    %103 = vector.broadcast %cst_46 : f32 to vector<24x128xf32>
    %104 = arith.maximumf %85, %103 : vector<24x128xf32>
    %105 = arith.truncf %104 : vector<24x128xf32> to vector<24x128xbf16>
    %c2304 = arith.constant 2304 : index
    %c0_47 = arith.constant 0 : index
    %106 = vector.load %arg3[%c2304, %c0_47] : memref<2688x128xbf16, #tpu.memory_space<vmem>>, vector<128x128xbf16>
    %cst_48 = arith.constant dense<0.000000e+00> : vector<24x128xf32>
    %107 = tpu.matmul %105, %106, %cst_48 {dimension_numbers = #tpu.dot_dimension_numbers<[1], [0], [0], [1], [0, 0, 1, 1], [], []>} : vector<24x128xbf16>, vector<128x128xbf16>, vector<24x128xf32> -> vector<24x128xf32>
    %108 = arith.addf %107, %102 : vector<24x128xf32>
    %109 = arith.truncf %102 : vector<24x128xf32> to vector<24x128xbf16>
    %110 = arith.truncf %108 : vector<24x128xf32> to vector<24x128xbf16>
    %111 = tpu.concatenate %109, %110 in 1 : vector<24x128xbf16>, vector<24x128xbf16> -> vector<24x256xbf16>
    %c2432 = arith.constant 2432 : index
    %c0_49 = arith.constant 0 : index
    %112 = vector.load %arg3[%c2432, %c0_49] : memref<2688x128xbf16, #tpu.memory_space<vmem>>, vector<256x128xbf16>
    %cst_50 = arith.constant dense<0.000000e+00> : vector<24x128xf32>
    %113 = tpu.matmul %111, %112, %cst_50 {dimension_numbers = #tpu.dot_dimension_numbers<[1], [0], [0], [1], [0, 0, 1, 1], [], []>} : vector<24x256xbf16>, vector<256x128xbf16>, vector<24x128xf32> -> vector<24x128xf32>
    %cst_51 = arith.constant 0.000000e+00 : f32
    %114 = vector.broadcast %cst_51 : f32 to vector<24x128xf32>
    %115 = arith.subf %114, %113 : vector<24x128xf32>
    %116 = math.exp %115 : vector<24x128xf32>
    %cst_52 = arith.constant 1.000000e+00 : f32
    %117 = vector.broadcast %cst_52 : f32 to vector<24x128xf32>
    %118 = arith.addf %117, %116 : vector<24x128xf32>
    %cst_53 = arith.constant 1.000000e+00 : f32
    %119 = vector.broadcast %cst_53 : f32 to vector<24x128xf32>
    %120 = arith.divf %119, %118 : vector<24x128xf32>
    %c0_54 = arith.constant 0 : index
    %c0_55 = arith.constant 0 : index
    %121 = vector.load %arg4[%c0_54, %c0_55] : memref<24x128xf32, #tpu.memory_space<vmem>>, vector<24x128xf32>
    tpu.vector_store %arg4[%c0_54, %c0_55], %120 {strides = array<i32>} : memref<24x128xf32, #tpu.memory_space<vmem>>, vector<24x128xf32>,
    return
  }
  func.func @transform_0(%arg0: i32) -> (i32, i32) {
    %c0_i32 = arith.constant 0 : i32
    %c0_i32_0 = arith.constant 0 : i32
    return %arg0, %c0_i32 : i32, i32
  }
  func.func @transform_1(%arg0: i32) -> (i32, i32) {
    %c0_i32 = arith.constant 0 : i32
    %c0_i32_0 = arith.constant 0 : i32
    %c0_i32_1 = arith.constant 0 : i32
    return %c0_i32, %c0_i32_0 : i32, i32
  }
  func.func @transform_2(%arg0: i32) -> (i32, i32) {
    %c0_i32 = arith.constant 0 : i32
    %c0_i32_0 = arith.constant 0 : i32
    %c0_i32_1 = arith.constant 0 : i32
    return %c0_i32, %c0_i32_0 : i32, i32
  }
  func.func @transform_3(%arg0: i32) -> (i32, i32) {
    %c0_i32 = arith.constant 0 : i32
    %c0_i32_0 = arith.constant 0 : i32
    return %arg0, %c0_i32 : i32, i32
  }
}

</mosaic_0001>

<llo_original>
// kernel: squeeze.1
$region0: #{squeeze.1}
  %s0 = inlined_call_operand.vmem [shape: f32[48], index: 0, kind: input, shape index: {}]
  %s1 = inlined_call_operand.vmem [shape: f32[2,24], index: 1, kind: output, shape index: {}]
  $region1: #{squeeze.1} parent=0
    #allocation0 [shape = 'u8[4096]{0}', space=vmem, size = 0x1000, scoped, tag = 'scoped mem for output reshape']
    #allocation1 [shape = 'u8[4096]{0}', space=vmem, size = 0x1000, scoped, tag = 'scoped mem for input reshape']
    %s3 = sshllo.u32 0, 1
    %v4 = vld [vmem:[%s0] sm:%s3]
    %5 = vst [vmem:[#allocation1] sm:%s3] %v4
    %v6 = vld [vmem:[#allocation1] sm:$0x1]
    %vm7 = vcmask 195584
    %8 = vst.msk [vmem:[#allocation0] sm:$0x1] %vm7, %v6
    %v9 = vld [vmem:[#allocation1] sm:$0x1]
    %10 = vrot.lane.b32.xlu0 %v9, 104
    %v11 = vpop.permute.xlu0 %10
    %vm12 = vcmask 195584
    %s13 = scalar_lea.vmem [#allocation0], 1
    %14 = vst.msk [vmem:[%s13] sm:$0x1] %vm12, %v11
    %s16 = sshllo.u32 0, 2
    %v18 = vld [vmem:[#allocation0] sm:%s16]
    %s19 = sshllo.u32 0, 2
    %20 = vst [vmem:[%s1] sm:%s19] %v18

// kernel: network_forward.1
$region0: #{network_forward.1}
  #allocation0 [shape = 'u32[]', space=smem, size = 0x4, offset = 0x4, fixed_abs, tag = 'smem constant byte address 0x4 - core index']
  #allocation1 [shape = 'u32[144,128]{1,0:T(1,128)}', space=vmem, size = 0x12000, scoped, tag = 'internal scratch']
  %s0 = inlined_call_operand.vmem [shape: f32[48,128], index: 0, kind: input, shape index: {}]
  %s1 = inlined_call_operand.vmem [shape: f32[24,128], index: 1, kind: input, shape index: {}]
  %s2 = inlined_call_operand.hbm [shape: bf16[2688,128], index: 2, kind: input, shape index: {}]
  %s3 = inlined_call_operand.vmem [shape: f32[48,128], index: 3, kind: output, shape index: {}]
  %s4 = sld [smem:[#allocation0]]
  $region49: #{network_forward.1} parent=0
    _
  %s6 = ssub.s32 1, %s4
  %s7 = scalar_select 0, %s6, %s4
  $region1: #{network_forward.1} parent=0
    #allocation2 [shape = 'u8[688128]{0}', space=vmem, size = 0xa8000, scoped, tag = 'input window, operand 2, single buffered']
    #allocation3 [shape = 's32[2]{0}', space=sflag, size = 0x8, scoped, tag = 'scoped memory for network_forward.1']
    %8 = vsyncpa [#allocation3], 0
    loop: start=0, step=1, limit=4
    $region2: #{network_forward.1} parent=1 // loop_pre_header
      _
    $region3: #{network_forward.1} parent=1 // loop_header
      %s10 = sphi 0, %s14
      %p11 = scmp.ge.s32.totalorder %s10, 4
      %s20 = sphi 0, %s22
      %s23 = sphi 0, %s20
      %s24 = sphi 0, %s23
      %s40 = sphi 0, %s24
      %s44 = sphi 0, %s44
      %s46 = sphi 0, %s44
      %s47 = sphi 0, %s46
      %s61 = sphi 0, %s47
      %s65 = sphi 0, %s65
      %s67 = sphi 0, %s65
      %s68 = sphi 0, %s67
      %s82 = sphi 0, %s68
      %s88 = sphi 0, %s90
      %s91 = sphi 0, %s88
      %s92 = sphi 0, %s91
      %s108 = sphi 0, %s92
    $region4: #{network_forward.1} parent=1 // loop_header_branch
      %13 = sbr.rel (%p11) target = $region8
    $region5: #{network_forward.1} parent=1 // loop_body
      %s15 = ssub.s32 %s10, 1
      %s16 = ssub.s32 %s10, 2
      %s17 = sadd.s32 %s10, 1
      %s18 = ssub.s32 %s10, %s17
      %p19 = scmp.eq.s32.totalorder %s18, 0
      %s21 = sadd.s32 %s20, 1
      %s22 = scalar_select %p19, %s20, %s21
      %p25 = pneg %p19
      %p26 = scmp.eq.s32.totalorder %s10, 1
      %p27 = por %p25, %p26
      %p28 = scmp.ne.s32.totalorder %s20, %s23
      %p29 = scmp.eq.s32.totalorder %s10, 0
      %p30 = por %p28, %p29
      %p31 = scmp.ne.s32.totalorder %s20, %s23
      %p32 = scmp.eq.s32.totalorder %s15, 1
      %p33 = por %p31, %p32
      %p34 = scmp.ne.s32.totalorder %s23, %s24
      %p35 = scmp.eq.s32.totalorder %s15, 0
      %p36 = por %p34, %p35
      %p37 = scmp.ne.s32.totalorder %s23, %s24
      %p38 = scmp.eq.s32.totalorder %s16, 1
      %p39 = por %p37, %p38
      %p41 = scmp.ne.s32.totalorder %s24, %s40
      %p42 = scmp.eq.s32.totalorder %s16, 0
      %p43 = por %p41, %p42
      %s45 = sadd.s32 %s44, 1
      %p48 = scmp.eq.s32.totalorder %s10, 1
      %p49 = scmp.ne.s32.totalorder %s44, %s46
      %p50 = scmp.eq.s32.totalorder %s10, 0
      %p51 = por %p49, %p50
      %p52 = scmp.ne.s32.totalorder %s44, %s46
      %p53 = scmp.eq.s32.totalorder %s15, 1
      %p54 = por %p52, %p53
      %p55 = scmp.ne.s32.totalorder %s46, %s47
      %p56 = scmp.eq.s32.totalorder %s15, 0
      %p57 = por %p55, %p56
      %p58 = scmp.ne.s32.totalorder %s46, %s47
      %p59 = scmp.eq.s32.totalorder %s16, 1
      %p60 = por %p58, %p59
      %p62 = scmp.ne.s32.totalorder %s47, %s61
      %p63 = scmp.eq.s32.totalorder %s16, 0
      %p64 = por %p62, %p63
      %s66 = sadd.s32 %s65, 1
      %p69 = scmp.eq.s32.totalorder %s10, 1
      %p70 = scmp.ne.s32.totalorder %s65, %s67
      %p71 = scmp.eq.s32.totalorder %s10, 0
      %p72 = por %p70, %p71
      %p73 = scmp.ne.s32.totalorder %s65, %s67
      %p74 = scmp.eq.s32.totalorder %s15, 1
      %p75 = por %p73, %p74
      %p76 = scmp.ne.s32.totalorder %s67, %s68
      %p77 = scmp.eq.s32.totalorder %s15, 0
      %p78 = por %p76, %p77
      %p79 = scmp.ne.s32.totalorder %s67, %s68
      %p80 = scmp.eq.s32.totalorder %s16, 1
      %p81 = por %p79, %p80
      %p83 = scmp.ne.s32.totalorder %s68, %s82
      %p84 = scmp.eq.s32.totalorder %s16, 0
      %p85 = por %p83, %p84
      %s86 = ssub.s32 %s10, %s17
      %p87 = scmp.eq.s32.totalorder %s86, 0
      %s89 = sadd.s32 %s88, 1
      %s90 = scalar_select %p87, %s88, %s89
      %p93 = pneg %p87
      %p94 = scmp.eq.s32.totalorder %s10, 1
      %p95 = por %p93, %p94
      %p96 = scmp.ne.s32.totalorder %s88, %s91
      %p97 = scmp.eq.s32.totalorder %s10, 0
      %p98 = por %p96, %p97
      %p99 = scmp.ne.s32.totalorder %s88, %s91
      %p100 = scmp.eq.s32.totalorder %s15, 1
      %p101 = por %p99, %p100
      %p102 = scmp.ne.s32.totalorder %s91, %s92
      %p103 = scmp.eq.s32.totalorder %s15, 0
      %p104 = por %p102, %p103
      %p105 = scmp.ne.s32.totalorder %s91, %s92
      %p106 = scmp.eq.s32.totalorder %s16, 1
      %p107 = por %p105, %p106
      %p109 = scmp.ne.s32.totalorder %s92, %s108
      %p110 = scmp.eq.s32.totalorder %s16, 0
      %p111 = por %p109, %p110
      %p112 = scmp.le.s32.totalorder 1, %s10
      %p113 = scmp.lt.s32.totalorder %s10, 3
      %p114 = pnand %p112, %p113
      %p115 = pneg %p114
      // Predicated region
      $region9: #{network_forward.1} parent=5 // pred_check
        _
      $region10: #{network_forward.1} parent=5 // pred_check_branch
        %117 = sbr.rel (%p114) target = $region12
      $region11: #{network_forward.1} parent=5 // pred_region
        %s118 = ssub.s32 %s10, 1
        // Predicated region
        $region13: #{network_forward.1} parent=11 // pred_check
          %p119 = pneg %p57
        $region14: #{network_forward.1} parent=11 // pred_check_branch
          %121 = sbr.rel (%p119) target = $region16
        $region15: #{network_forward.1} parent=11 // pred_region
          _
        $region16: #{network_forward.1} parent=11 // pred_fallthru
          _
        // Predicated region
        $region17: #{network_forward.1} parent=11 // pred_check
          %p122 = pneg %p78
        $region18: #{network_forward.1} parent=11 // pred_check_branch
          %124 = sbr.rel (%p122) target = $region20
        $region19: #{network_forward.1} parent=11 // pred_region
          %s126 = ssub.s32 21504, 21504
          %127 = vsyncadd [#allocation3], %s126
          %s128 = sshll.u32 [#allocation2], 4
          %s129 = int_to_ptr.vmem [resolvable:$true] %s128
          %134 = dma.hbm_to_vmem [thread:$0]  %s2, 21504, %s129, [#allocation3], 64, 64, 4
        $region20: #{network_forward.1} parent=11 // pred_fallthru
          _
      $region12: #{network_forward.1} parent=5 // pred_fallthru
        _
      %p135 = scmp.lt.s32.totalorder %s10, 2
      // Predicated region
      $region21: #{network_forward.1} parent=5 // pred_check
        %p136 = pneg %p135
      $region22: #{network_forward.1} parent=5 // pred_check_branch
        %138 = sbr.rel (%p136) target = $region24
      $region23: #{network_forward.1} parent=5 // pred_region
        // Predicated region
        $region25: #{network_forward.1} parent=23 // pred_check
          %p139 = pneg %p30
        $region26: #{network_forward.1} parent=23 // pred_check_branch
          %141 = sbr.rel (%p139) target = $region28
        $region27: #{network_forward.1} parent=23 // pred_region
          %s142 = smul.u32 3, %s10
          %p143 = scmp.lt.s32.totalorder %s142, 5
          %s144 = scalar_select %p143, %s142, 5
          %s145 = smul.addr %s144, 8
          %s146 = scalar_lea.vmem %s0, %s145
          %s147 = smul.u32 3, %s10
        $region28: #{network_forward.1} parent=23 // pred_fallthru
          _
      $region24: #{network_forward.1} parent=5 // pred_fallthru
        _
      %p148 = scmp.le.s32.totalorder 1, %s10
      %p149 = scmp.lt.s32.totalorder %s10, 3
      %p150 = pnand %p148, %p149
      %p151 = pneg %p150
      // Predicated region
      $region29: #{network_forward.1} parent=5 // pred_check
        _
      $region30: #{network_forward.1} parent=5 // pred_check_branch
        %153 = sbr.rel (%p150) target = $region32
      $region31: #{network_forward.1} parent=5 // pred_region
        %s154 = ssub.s32 %s10, 1
        // Predicated region
        $region33: #{network_forward.1} parent=31 // pred_check
          %p155 = pneg %p78
        $region34: #{network_forward.1} parent=31 // pred_check_branch
          %157 = sbr.rel (%p155) target = $region36
        $region35: #{network_forward.1} parent=31 // pred_region
          %158 = dma.done [#allocation3], 21504
        $region36: #{network_forward.1} parent=31 // pred_fallthru
          _
        %s159 = smul.u32 3, %s15
        %p160 = scmp.lt.s32.totalorder %s159, 5
        %s161 = scalar_select %p160, %s159, 5
        %s162 = smul.addr %s161, 8
        %s163 = scalar_lea.vmem %s0, %s162
        %p164 = pneg %p36
        %p165 = pneg %p33
        %p166 = pneg %p57
        %p167 = pneg %p54
        %p168 = pneg %p78
        %p169 = pneg %p75
        %p170 = pneg %p104
        %p171 = pneg %p101
        %s172 = smul.u32 3, %s15
        %p173 = scmp.lt.s32.totalorder %s172, 5
        %s174 = scalar_select %p173, %s172, 5
        %s175 = smul.addr %s174, 8
        %s176 = scalar_lea.vmem %s3, %s175
        %s177 = smul.u32 3, %s15
        %p178 = scmp.lt.s32.totalorder %s177, 5
        %s179 = scalar_select %p178, %s177, 5
        %s180 = smul.addr %s179, 8
        %s181 = scalar_lea.vmem %s0, %s180
        %s182 = smul.u32 3, %s15
        %s183 = smul.u32 3, %s15
        %p184 = scmp.lt.s32.totalorder %s183, 5
        %s185 = scalar_select %p184, %s183, 5
        %s186 = smul.addr %s185, 8
        %s187 = scalar_lea.vmem %s3, %s186
        %s188 = smul.u32 3, %s15
        %v190 = vld [vmem:[%s1] sm:$0xff]
        %v191 = vld [vmem:[%s1 + $0x8] sm:$0xff]
        %v192 = vld [vmem:[%s1 + $0x10] sm:$0xff]
        %v193 = vld [vmem:[%s181] sm:$0xff]
        %v194 = vld [vmem:[%s181 + $0x8] sm:$0xff]
        %v195 = vld [vmem:[%s181 + $0x10] sm:$0xff]
        %v196 = vrot.slane %v193, 7
        %v197 = vrot.slane %v194, 7
        %v198 = vrot.slane %v195, 7
        %v199 = vlaneseq
        %v200 = vshrl.u32 %v199, 7
        %vm201 = vcmp.lt.s32.totalorder %v200, 1
        %v202 = vsel %vm201, %v197, %v198
        %v203 = vsel %vm201, %v196, %v197
        %v204 = vsel %vm201, %v198, %v196
        %v205 = vpack.c.bf16 %v203, %v204
        %v206 = vpack.c.bf16 %v202, %v202
        %v207 = vpack.c.bf16 %v194, %v193
        %v208 = vpack.c.bf16 %v195, %v195
        %v209 = vrot.slane %v193, 1
        %v210 = vrot.slane %v194, 1
        %v211 = vrot.slane %v195, 1
        %vm212 = vcmp.lt.s32.totalorder %v200, 7
        %v213 = vsel %vm212, %v210, %v211
        %v214 = vsel %vm212, %v209, %v210
        %v215 = vsel %vm212, %v211, %v209
        %v216 = vpack.c.bf16 %v213, %v214
        %v217 = vpack.c.bf16 %v215, %v215
        %v218 = vld [vmem:[#allocation2] sm:$0xf]
        %v219 = vld [vmem:[#allocation2 + $0x4] sm:$0xf]
        %v220 = vld [vmem:[#allocation2 + $0x8] sm:$0xf]
        %v221 = vld [vmem:[#allocation2 + $0xc] sm:$0xf]
        %v222 = vld [vmem:[#allocation2 + $0x10] sm:$0xf]
        %v223 = vld [vmem:[#allocation2 + $0x14] sm:$0xf]
        %v224 = vld [vmem:[#allocation2 + $0x18] sm:$0xf]
        %v225 = vld [vmem:[#allocation2 + $0x1c] sm:$0xf]
        %v226 = vld [vmem:[#allocation2 + $0x20] sm:$0xf]
        %v227 = vld [vmem:[#allocation2 + $0x24] sm:$0xf]
        %v228 = vld [vmem:[#allocation2 + $0x28] sm:$0xf]
        %v229 = vld [vmem:[#allocation2 + $0x2c] sm:$0xf]
        %v230 = vld [vmem:[#allocation2 + $0x30] sm:$0xf]
        %v231 = vld [vmem:[#allocation2 + $0x34] sm:$0xf]
        %v232 = vld [vmem:[#allocation2 + $0x38] sm:$0xf]
        %v233 = vld [vmem:[#allocation2 + $0x3c] sm:$0xf]
        %v234 = vld [vmem:[#allocation2 + $0x40] sm:$0xf]
        %v235 = vld [vmem:[#allocation2 + $0x44] sm:$0xf]
        %v236 = vld [vmem:[#allocation2 + $0x48] sm:$0xf]
        %v237 = vld [vmem:[#allocation2 + $0x4c] sm:$0xf]
        %v238 = vld [vmem:[#allocation2 + $0x50] sm:$0xf]
        %v239 = vld [vmem:[#allocation2 + $0x54] sm:$0xf]
        %v240 = vld [vmem:[#allocation2 + $0x58] sm:$0xf]
        %v241 = vld [vmem:[#allocation2 + $0x5c] sm:$0xf]
        %v242 = vld [vmem:[#allocation2 + $0x60] sm:$0xf]
        %v243 = vld [vmem:[#allocation2 + $0x64] sm:$0xf]
        %v244 = vld [vmem:[#allocation2 + $0x68] sm:$0xf]
        %v245 = vld [vmem:[#allocation2 + $0x6c] sm:$0xf]
        %v246 = vld [vmem:[#allocation2 + $0x70] sm:$0xf]
        %v247 = vld [vmem:[#allocation2 + $0x74] sm:$0xf]
        %v248 = vld [vmem:[#allocation2 + $0x78] sm:$0xf]
        %v249 = vld [vmem:[#allocation2 + $0x7c] sm:$0xf]
        %v250 = vld [vmem:[#allocation2 + $0x80] sm:$0xf]
        %v251 = vld [vmem:[#allocation2 + $0x84] sm:$0xf]
        %v252 = vld [vmem:[#allocation2 + $0x88] sm:$0xf]
        %v253 = vld [vmem:[#allocation2 + $0x8c] sm:$0xf]
        %v254 = vld [vmem:[#allocation2 + $0x90] sm:$0xf]
        %v255 = vld [vmem:[#allocation2 + $0x94] sm:$0xf]
        %v256 = vld [vmem:[#allocation2 + $0x98] sm:$0xf]
        %v257 = vld [vmem:[#allocation2 + $0x9c] sm:$0xf]
        %v258 = vld [vmem:[#allocation2 + $0xa0] sm:$0xf]
        %v259 = vld [vmem:[#allocation2 + $0xa4] sm:$0xf]
        %v260 = vld [vmem:[#allocation2 + $0xa8] sm:$0xf]
        %v261 = vld [vmem:[#allocation2 + $0xac] sm:$0xf]
        %v262 = vld [vmem:[#allocation2 + $0xb0] sm:$0xf]
        %v263 = vld [vmem:[#allocation2 + $0xb4] sm:$0xf]
        %v264 = vld [vmem:[#allocation2 + $0xb8] sm:$0xf]
        %v265 = vld [vmem:[#allocation2 + $0xbc] sm:$0xf]
        %v314 = vunpack.c.l.b16 %v218
        %v315 = vunpack.c.l.b16 %v219
        %v316 = vunpack.c.l.b16 %v220
        %v317 = vunpack.c.l.b16 %v221
        %v318 = vunpack.c.l.b16 %v222
        %v319 = vunpack.c.l.b16 %v223
        %v320 = vunpack.c.l.b16 %v224
        %v321 = vunpack.c.l.b16 %v225
        %v322 = vunpack.c.l.b16 %v226
        %v323 = vunpack.c.l.b16 %v227
        %v324 = vunpack.c.l.b16 %v228
        %v325 = vunpack.c.l.b16 %v229
        %v326 = vunpack.c.l.b16 %v230
        %v327 = vunpack.c.l.b16 %v231
        %v328 = vunpack.c.l.b16 %v232
        %v329 = vunpack.c.l.b16 %v233
        %v330 = vunpack.c.l.b16 %v234
        %v331 = vunpack.c.l.b16 %v235
        %v332 = vunpack.c.l.b16 %v236
        %v333 = vunpack.c.l.b16 %v237
        %v334 = vunpack.c.l.b16 %v238
        %v335 = vunpack.c.l.b16 %v239
        %v336 = vunpack.c.l.b16 %v240
        %v337 = vunpack.c.l.b16 %v241
        %v338 = vunpack.c.l.b16 %v242
        %v339 = vunpack.c.l.b16 %v243
        %v340 = vunpack.c.l.b16 %v244
        %v341 = vunpack.c.l.b16 %v245
        %v342 = vunpack.c.l.b16 %v246
        %v343 = vunpack.c.l.b16 %v247
        %v344 = vunpack.c.l.b16 %v248
        %v345 = vunpack.c.l.b16 %v249
        %v346 = vunpack.c.l.b16 %v250
        %v347 = vunpack.c.l.b16 %v251
        %v348 = vunpack.c.l.b16 %v252
        %v349 = vunpack.c.l.b16 %v253
        %v350 = vunpack.c.l.b16 %v254
        %v351 = vunpack.c.l.b16 %v255
        %v352 = vunpack.c.l.b16 %v256
        %v353 = vunpack.c.l.b16 %v257
        %v354 = vunpack.c.l.b16 %v258
        %v355 = vunpack.c.l.b16 %v259
        %v356 = vunpack.c.l.b16 %v260
        %v357 = vunpack.c.l.b16 %v261
        %v358 = vunpack.c.l.b16 %v262
        %v359 = vunpack.c.l.b16 %v263
        %v360 = vunpack.c.l.b16 %v264
        %v361 = vunpack.c.l.b16 %v265
        %v362 = vpack.c.b16 %v315, %v314
        %v363 = vpack.c.b16 %v317, %v316
        %v364 = vpack.c.b16 %v319, %v318
        %v365 = vpack.c.b16 %v321, %v320
        %v366 = vpack.c.b16 %v323, %v322
        %v367 = vpack.c.b16 %v325, %v324
        %v368 = vpack.c.b16 %v327, %v326
        %v369 = vpack.c.b16 %v329, %v328
        %v370 = vpack.c.b16 %v331, %v330
        %v371 = vpack.c.b16 %v333, %v332
        %v372 = vpack.c.b16 %v335, %v334
        %v373 = vpack.c.b16 %v337, %v336
        %v374 = vpack.c.b16 %v339, %v338
        %v375 = vpack.c.b16 %v341, %v340
        %v376 = vpack.c.b16 %v343, %v342
        %v377 = vpack.c.b16 %v345, %v344
        %v378 = vpack.c.b16 %v347, %v346
        %v379 = vpack.c.b16 %v349, %v348
        %v380 = vpack.c.b16 %v351, %v350
        %v381 = vpack.c.b16 %v353, %v352
        %v382 = vpack.c.b16 %v355, %v354
        %v383 = vpack.c.b16 %v357, %v356
        %v384 = vpack.c.b16 %v359, %v358
        %v385 = vpack.c.b16 %v361, %v360
        %410 = vmatprep.subr.bf16.mxu0 0
        %411 = vmatpush1.bf16.msra.mxu0 %v362
        %412 = vmatprep.subr.bf16.mxu0 0
        %413 = vmatpush1.bf16.msra.mxu0 %v363
        %414 = vmatprep.subr.bf16.mxu0 0
        %415 = vmatpush1.bf16.msra.mxu0 %v364
        %416 = vmatprep.subr.bf16.mxu0 0
        %417 = vmatpush1.bf16.msra.mxu0 %v365
        %418 = vmatprep.subr.bf16.mxu0 0
        %419 = vmatpush1.bf16.msra.mxu0 %v366
        %420 = vmatprep.subr.bf16.mxu0 0
        %421 = vmatpush1.bf16.msra.mxu0 %v367
        %422 = vmatprep.subr.bf16.mxu0 0
        %423 = vmatpush1.bf16.msra.mxu0 %v368
        %424 = vmatprep.subr.bf16.mxu0 0
        %425 = vmatpush1.bf16.msra.mxu0 %v369
        %426 = vmatprep.subr.bf16.mxu0 0
        %427 = vmatpush1.bf16.msra.mxu0 %v370
        %428 = vmatprep.subr.bf16.mxu0 0
        %429 = vmatpush1.bf16.msra.mxu0 %v371
        %430 = vmatprep.subr.bf16.mxu0 0
        %431 = vmatpush1.bf16.msra.mxu0 %v372
        %432 = vmatprep.subr.bf16.mxu0 0
        %433 = vmatpush1.bf16.msra.mxu0 %v373
        %434 = vmatprep.subr.bf16.mxu0 0
        %435 = vmatpush1.bf16.msra.mxu0 %v374
        %436 = vmatprep.subr.bf16.mxu0 0
        %437 = vmatpush1.bf16.msra.mxu0 %v375
        %438 = vmatprep.subr.bf16.mxu0 0
        %439 = vmatpush1.bf16.msra.mxu0 %v376
        %440 = vmatprep.subr.bf16.mxu0 0
        %441 = vmatpush1.bf16.msra.mxu0 %v377
        %442 = vmatprep.mubr.bf16.mxu0 %v207
        %443 = vmatmul.mubr.bf16.gmra.mrb[0].mxu0 %v205
        %v444 = vpop.f32.mrb[0].mxu0
        %v445 = vadd.f32 0.0, %v444
        %v446 = vpop.f32.mrb[0].mxu0
        %v447 = vpop.f32.mrb[0].mxu0
        %v448 = vadd.f32 0.0, %v447
        %v449 = vpop.f32.mrb[0].mxu0
        %450 = vmatprep.mubr.bf16.mxu0 %v208
        %451 = vmatmul.mubr.bf16.gmra.mrb[0].mxu0 %v206
        %v452 = vpop.f32.mrb[0].mxu0
        %v453 = vadd.f32 0.0, %v452
        %v454 = vpop.f32.mrb[0].mxu0
        %v455 = vpop.f32.mrb[0].mxu0
        %v456 = vpop.f32.mrb[0].mxu0
        %457 = vdwg.mxu0
        %458 = vmatprep.subr.bf16.mxu0 0
        %459 = vmatpush1.bf16.msra.mxu0 %v378
        %460 = vmatprep.subr.bf16.mxu0 0
        %461 = vmatpush1.bf16.msra.mxu0 %v379
        %462 = vmatprep.subr.bf16.mxu0 0
        %463 = vmatpush1.bf16.msra.mxu0 %v380
        %464 = vmatprep.subr.bf16.mxu0 0
        %465 = vmatpush1.bf16.msra.mxu0 %v381
        %466 = vmatprep.subr.bf16.mxu0 0
        %467 = vmatpush1.bf16.msra.mxu0 %v382
        %468 = vmatprep.subr.bf16.mxu0 0
        %469 = vmatpush1.bf16.msra.mxu0 %v383
        %470 = vmatprep.subr.bf16.mxu0 0
        %471 = vmatpush1.bf16.msra.mxu0 %v384
        %472 = vmatprep.subr.bf16.mxu0 0
        %473 = vmatpush1.bf16.msra.mxu0 %v385
        %474 = vmatprep.subr.bf16.mxu0 0
        %475 = vmatpush1.bf16.msra.mxu0 0
        %476 = vmatprep.subr.bf16.mxu0 0
        %477 = vmatpush1.bf16.msra.mxu0 0
        %478 = vmatprep.subr.bf16.mxu0 0
        %479 = vmatpush1.bf16.msra.mxu0 0
        %480 = vmatprep.subr.bf16.mxu0 0
        %481 = vmatpush1.bf16.msra.mxu0 0
        %482 = vmatprep.subr.bf16.mxu0 0
        %483 = vmatpush1.bf16.msra.mxu0 0
        %484 = vmatprep.subr.bf16.mxu0 0
        %485 = vmatpush1.bf16.msra.mxu0 0
        %486 = vmatprep.subr.bf16.mxu0 0
        %487 = vmatpush1.bf16.msra.mxu0 0
        %488 = vmatprep.subr.bf16.mxu0 0
        %489 = vmatpush1.bf16.msra.mxu0 0
        %490 = vmatprep.mubr.bf16.mxu0 0
        %491 = vmatmul.mubr.bf16.gmra.mrb[0].mxu0 %v216
        %v492 = vpop.f32.mrb[0].mxu0
        %v493 = vadd.f32 %v445, %v492
        %v494 = vpop.f32.mrb[0].mxu0
        %v495 = vpop.f32.mrb[0].mxu0
        %v496 = vadd.f32 %v448, %v495
        %v497 = vpop.f32.mrb[0].mxu0
        %498 = vmatprep.mubr.bf16.mxu0 0
        %499 = vmatmul.mubr.bf16.gmra.mrb[0].mxu0 %v217
        %v500 = vpop.f32.mrb[0].mxu0
        %v501 = vadd.f32 %v453, %v500
        %v502 = vpop.f32.mrb[0].mxu0
        %v503 = vpop.f32.mrb[0].mxu0
        %v504 = vpop.f32.mrb[0].mxu0
        %505 = vdwg.mxu0
        %v506 = vmul.f32 %v493, 0.5
        %v507 = vmul.f32 %v496, 0.5
        %v508 = vmul.f32 %v501, 0.5
        %v509 = vmul.f32 %v493, 0.70710677
        %v510 = vmul.f32 %v496, 0.70710677
        %v511 = vmul.f32 %v501, 0.70710677
        %vm512 = vcmp.ge.f32.partialorder %v509, 0.0
        %vm513 = vcmp.ge.f32.partialorder %v510, 0.0
        %vm514 = vcmp.ge.f32.partialorder %v511, 0.0
        %v515 = vsel %vm512, 1.0, -1.0
        %v516 = vsel %vm513, 1.0, -1.0
        %v517 = vsel %vm514, 1.0, -1.0
        %v518 = vand.u32 2147483647, %v509
        %v519 = vand.u32 2147483647, %v510
        %v520 = vand.u32 2147483647, %v511
        %v521 = vmul.f32 %v518, 0.3275911
        %v522 = vmul.f32 %v519, 0.3275911
        %v523 = vmul.f32 %v520, 0.3275911
        %v524 = vadd.f32 %v521, 1.0
        %v525 = vadd.f32 %v522, 1.0
        %v526 = vadd.f32 %v523, 1.0
        %v527 = vrcp.pop %v524
        %v528 = vmul.f32 1.0, %v527
        %v529 = vrcp.pop %v525
        %v530 = vmul.f32 1.0, %v529
        %v531 = vrcp.pop %v526
        %v532 = vmul.f32 1.0, %v531
        %v533 = vmul.f32 %v528, 1.0614054
        %v534 = vmul.f32 %v530, 1.0614054
        %v535 = vmul.f32 %v532, 1.0614054
        %v536 = vadd.f32 %v533, -1.4531521
        %v537 = vadd.f32 %v534, -1.4531521
        %v538 = vadd.f32 %v535, -1.4531521
        %v539 = vmul.f32 %v528, %v536
        %v540 = vmul.f32 %v530, %v537
        %v541 = vmul.f32 %v532, %v538
        %v542 = vadd.f32 %v539, 1.4214138
        %v543 = vadd.f32 %v540, 1.4214138
        %v544 = vadd.f32 %v541, 1.4214138
        %v545 = vmul.f32 %v528, %v542
        %v546 = vmul.f32 %v530, %v543
        %v547 = vmul.f32 %v532, %v544
        %v548 = vadd.f32 %v545, -0.28449672
        %v549 = vadd.f32 %v546, -0.28449672
        %v550 = vadd.f32 %v547, -0.28449672
        %v551 = vmul.f32 %v528, %v548
        %v552 = vmul.f32 %v530, %v549
        %v553 = vmul.f32 %v532, %v550
        %v554 = vadd.f32 %v551, 0.2548296
        %v555 = vadd.f32 %v552, 0.2548296
        %v556 = vadd.f32 %v553, 0.2548296
        %v557 = vmul.f32 %v528, %v554
        %v558 = vmul.f32 %v530, %v555
        %v559 = vmul.f32 %v532, %v556
        %v560 = vsub.f32 0.0, %v518
        %v561 = vsub.f32 0.0, %v519
        %v562 = vsub.f32 0.0, %v520
        %v563 = vmul.f32 %v560, %v518
        %v564 = vmul.f32 %v561, %v519
        %v565 = vmul.f32 %v562, %v520
        %v566 = vmul.f32 %v563, 1.442695
        %v567 = vpow.pop %v566
        %v568 = vmul.f32 %v564, 1.442695
        %v569 = vpow.pop %v568
        %v570 = vmul.f32 %v565, 1.442695
        %v571 = vpow.pop %v570
        %v572 = vmul.f32 %v557, %v567
        %v573 = vmul.f32 %v558, %v569
        %v574 = vmul.f32 %v559, %v571
        %v575 = vsub.f32 1.0, %v572
        %v576 = vsub.f32 1.0, %v573
        %v577 = vsub.f32 1.0, %v574
        %v578 = vmul.f32 %v515, %v575
        %v579 = vmul.f32 %v516, %v576
        %v580 = vmul.f32 %v517, %v577
        %v581 = vadd.f32 %v578, 1.0
        %v582 = vadd.f32 %v579, 1.0
        %v583 = vadd.f32 %v580, 1.0
        %v584 = vmul.f32 %v506, %v581
        %v585 = vmul.f32 %v507, %v582
        %v586 = vmul.f32 %v508, %v583
        %v587 = vmul.f32 %v584, %v190
        %v588 = vmul.f32 %v585, %v191
        %v589 = vmul.f32 %v586, %v192
        %v590 = vrot.slane %v587, 7
        %v591 = vrot.slane %v588, 7
        %v592 = vrot.slane %v589, 7
        %v593 = vsel %vm201, %v591, %v592
        %v594 = vsel %vm201, %v590, %v591
        %v595 = vsel %vm201, %v592, %v590
        %v596 = vpack.c.bf16 %v594, %v595
        %v597 = vpack.c.bf16 %v593, %v593
        %v598 = vpack.c.bf16 %v588, %v587
        %v599 = vpack.c.bf16 %v589, %v589
        %v600 = vrot.slane %v587, 1
        %v601 = vrot.slane %v588, 1
        %v602 = vrot.slane %v589, 1
        %v603 = vsel %vm212, %v601, %v602
        %v604 = vsel %vm212, %v600, %v601
        %v605 = vsel %vm212, %v602, %v600
        %v606 = vpack.c.bf16 %v603, %v604
        %v607 = vpack.c.bf16 %v605, %v605
        %v608 = vld [vmem:[#allocation2 + $0xc0] sm:$0xf]
        %v609 = vld [vmem:[#allocation2 + $0xc4] sm:$0xf]
        %v610 = vld [vmem:[#allocation2 + $0xc8] sm:$0xf]
        %v611 = vld [vmem:[#allocation2 + $0xcc] sm:$0xf]
        %v612 = vld [vmem:[#allocation2 + $0xd0] sm:$0xf]
        %v613 = vld [vmem:[#allocation2 + $0xd4] sm:$0xf]
        %v614 = vld [vmem:[#allocation2 + $0xd8] sm:$0xf]
        %v615 = vld [vmem:[#allocation2 + $0xdc] sm:$0xf]
        %v616 = vld [vmem:[#allocation2 + $0xe0] sm:$0xf]
        %v617 = vld [vmem:[#allocation2 + $0xe4] sm:$0xf]
        %v618 = vld [vmem:[#allocation2 + $0xe8] sm:$0xf]
        %v619 = vld [vmem:[#allocation2 + $0xec] sm:$0xf]
        %v620 = vld [vmem:[#allocation2 + $0xf0] sm:$0xf]
        %v621 = vld [vmem:[#allocation2 + $0xf4] sm:$0xf]
        %v622 = vld [vmem:[#allocation2 + $0xf8] sm:$0xf]
        %v623 = vld [vmem:[#allocation2 + $0xfc] sm:$0xf]
        %v624 = vld [vmem:[#allocation2 + $0x100] sm:$0xf]
        %v625 = vld [vmem:[#allocation2 + $0x104] sm:$0xf]
        %v626 = vld [vmem:[#allocation2 + $0x108] sm:$0xf]
        %v627 = vld [vmem:[#allocation2 + $0x10c] sm:$0xf]
        %v628 = vld [vmem:[#allocation2 + $0x110] sm:$0xf]
        %v629 = vld [vmem:[#allocation2 + $0x114] sm:$0xf]
        %v630 = vld [vmem:[#allocation2 + $0x118] sm:$0xf]
        %v631 = vld [vmem:[#allocation2 + $0x11c] sm:$0xf]
        %v632 = vld [vmem:[#allocation2 + $0x120] sm:$0xf]
        %v633 = vld [vmem:[#allocation2 + $0x124] sm:$0xf]
        %v634 = vld [vmem:[#allocation2 + $0x128] sm:$0xf]
        %v635 = vld [vmem:[#allocation2 + $0x12c] sm:$0xf]
        %v636 = vld [vmem:[#allocation2 + $0x130] sm:$0xf]
        %v637 = vld [vmem:[#allocation2 + $0x134] sm:$0xf]
        %v638 = vld [vmem:[#allocation2 + $0x138] sm:$0xf]
        %v639 = vld [vmem:[#allocation2 + $0x13c] sm:$0xf]
        %v640 = vld [vmem:[#allocation2 + $0x140] sm:$0xf]
        %v641 = vld [vmem:[#allocation2 + $0x144] sm:$0xf]
        %v642 = vld [vmem:[#allocation2 + $0x148] sm:$0xf]
        %v643 = vld [vmem:[#allocation2 + $0x14c] sm:$0xf]
        %v644 = vld [vmem:[#allocation2 + $0x150] sm:$0xf]
        %v645 = vld [vmem:[#allocation2 + $0x154] sm:$0xf]
        %v646 = vld [vmem:[#allocation2 + $0x158] sm:$0xf]
        %v647 = vld [vmem:[#allocation2 + $0x15c] sm:$0xf]
        %v648 = vld [vmem:[#allocation2 + $0x160] sm:$0xf]
        %v649 = vld [vmem:[#allocation2 + $0x164] sm:$0xf]
        %v650 = vld [vmem:[#allocation2 + $0x168] sm:$0xf]
        %v651 = vld [vmem:[#allocation2 + $0x16c] sm:$0xf]
        %v652 = vld [vmem:[#allocation2 + $0x170] sm:$0xf]
        %v653 = vld [vmem:[#allocation2 + $0x174] sm:$0xf]
        %v654 = vld [vmem:[#allocation2 + $0x178] sm:$0xf]
        %v655 = vld [vmem:[#allocation2 + $0x17c] sm:$0xf]
        %v704 = vunpack.c.l.b16 %v608
        %v705 = vunpack.c.l.b16 %v609
        %v706 = vunpack.c.l.b16 %v610
        %v707 = vunpack.c.l.b16 %v611
        %v708 = vunpack.c.l.b16 %v612
        %v709 = vunpack.c.l.b16 %v613
        %v710 = vunpack.c.l.b16 %v614
        %v711 = vunpack.c.l.b16 %v615
        %v712 = vunpack.c.l.b16 %v616
        %v713 = vunpack.c.l.b16 %v617
        %v714 = vunpack.c.l.b16 %v618
        %v715 = vunpack.c.l.b16 %v619
        %v716 = vunpack.c.l.b16 %v620
        %v717 = vunpack.c.l.b16 %v621
        %v718 = vunpack.c.l.b16 %v622
        %v719 = vunpack.c.l.b16 %v623
        %v720 = vunpack.c.l.b16 %v624
        %v721 = vunpack.c.l.b16 %v625
        %v722 = vunpack.c.l.b16 %v626
        %v723 = vunpack.c.l.b16 %v627
        %v724 = vunpack.c.l.b16 %v628
        %v725 = vunpack.c.l.b16 %v629
        %v726 = vunpack.c.l.b16 %v630
        %v727 = vunpack.c.l.b16 %v631
        %v728 = vunpack.c.l.b16 %v632
        %v729 = vunpack.c.l.b16 %v633
        %v730 = vunpack.c.l.b16 %v634
        %v731 = vunpack.c.l.b16 %v635
        %v732 = vunpack.c.l.b16 %v636
        %v733 = vunpack.c.l.b16 %v637
        %v734 = vunpack.c.l.b16 %v638
        %v735 = vunpack.c.l.b16 %v639
        %v736 = vunpack.c.l.b16 %v640
        %v737 = vunpack.c.l.b16 %v641
        %v738 = vunpack.c.l.b16 %v642
        %v739 = vunpack.c.l.b16 %v643
        %v740 = vunpack.c.l.b16 %v644
        %v741 = vunpack.c.l.b16 %v645
        %v742 = vunpack.c.l.b16 %v646
        %v743 = vunpack.c.l.b16 %v647
        %v744 = vunpack.c.l.b16 %v648
        %v745 = vunpack.c.l.b16 %v649
        %v746 = vunpack.c.l.b16 %v650
        %v747 = vunpack.c.l.b16 %v651
        %v748 = vunpack.c.l.b16 %v652
        %v749 = vunpack.c.l.b16 %v653
        %v750 = vunpack.c.l.b16 %v654
        %v751 = vunpack.c.l.b16 %v655
        %v752 = vpack.c.b16 %v705, %v704
        %v753 = vpack.c.b16 %v707, %v706
        %v754 = vpack.c.b16 %v709, %v708
        %v755 = vpack.c.b16 %v711, %v710
        %v756 = vpack.c.b16 %v713, %v712
        %v757 = vpack.c.b16 %v715, %v714
        %v758 = vpack.c.b16 %v717, %v716
        %v759 = vpack.c.b16 %v719, %v718
        %v760 = vpack.c.b16 %v721, %v720
        %v761 = vpack.c.b16 %v723, %v722
        %v762 = vpack.c.b16 %v725, %v724
        %v763 = vpack.c.b16 %v727, %v726
        %v764 = vpack.c.b16 %v729, %v728
        %v765 = vpack.c.b16 %v731, %v730
        %v766 = vpack.c.b16 %v733, %v732
        %v767 = vpack.c.b16 %v735, %v734
        %v768 = vpack.c.b16 %v737, %v736
        %v769 = vpack.c.b16 %v739, %v738
        %v770 = vpack.c.b16 %v741, %v740
        %v771 = vpack.c.b16 %v743, %v742
        %v772 = vpack.c.b16 %v745, %v744
        %v773 = vpack.c.b16 %v747, %v746
        %v774 = vpack.c.b16 %v749, %v748
        %v775 = vpack.c.b16 %v751, %v750
        %800 = vmatprep.subr.bf16.mxu0 0
        %801 = vmatpush1.bf16.msra.mxu0 %v752
        %802 = vmatprep.subr.bf16.mxu0 0
        %803 = vmatpush1.bf16.msra.mxu0 %v753
        %804 = vmatprep.subr.bf16.mxu0 0
        %805 = vmatpush1.bf16.msra.mxu0 %v754
        %806 = vmatprep.subr.bf16.mxu0 0
        %807 = vmatpush1.bf16.msra.mxu0 %v755
        %808 = vmatprep.subr.bf16.mxu0 0
        %809 = vmatpush1.bf16.msra.mxu0 %v756
        %810 = vmatprep.subr.bf16.mxu0 0
        %811 = vmatpush1.bf16.msra.mxu0 %v757
        %812 = vmatprep.subr.bf16.mxu0 0
        %813 = vmatpush1.bf16.msra.mxu0 %v758
        %814 = vmatprep.subr.bf16.mxu0 0
        %815 = vmatpush1.bf16.msra.mxu0 %v759
        %816 = vmatprep.subr.bf16.mxu0 0
        %817 = vmatpush1.bf16.msra.mxu0 %v760
        %818 = vmatprep.subr.bf16.mxu0 0
        %819 = vmatpush1.bf16.msra.mxu0 %v761
        %820 = vmatprep.subr.bf16.mxu0 0
        %821 = vmatpush1.bf16.msra.mxu0 %v762
        %822 = vmatprep.subr.bf16.mxu0 0
        %823 = vmatpush1.bf16.msra.mxu0 %v763
        %824 = vmatprep.subr.bf16.mxu0 0
        %825 = vmatpush1.bf16.msra.mxu0 %v764
        %826 = vmatprep.subr.bf16.mxu0 0
        %827 = vmatpush1.bf16.msra.mxu0 %v765
        %828 = vmatprep.subr.bf16.mxu0 0
        %829 = vmatpush1.bf16.msra.mxu0 %v766
        %830 = vmatprep.subr.bf16.mxu0 0
        %831 = vmatpush1.bf16.msra.mxu0 %v767
        %832 = vmatprep.mubr.bf16.mxu0 %v598
        %833 = vmatmul.mubr.bf16.gmra.mrb[0].mxu0 %v596
        %v834 = vpop.f32.mrb[0].mxu0
        %v835 = vadd.f32 0.0, %v834
        %v836 = vpop.f32.mrb[0].mxu0
        %v837 = vpop.f32.mrb[0].mxu0
        %v838 = vadd.f32 0.0, %v837
        %v839 = vpop.f32.mrb[0].mxu0
        %840 = vmatprep.mubr.bf16.mxu0 %v599
        %841 = vmatmul.mubr.bf16.gmra.mrb[0].mxu0 %v597
        %v842 = vpop.f32.mrb[0].mxu0
        %v843 = vadd.f32 0.0, %v842
        %v844 = vpop.f32.mrb[0].mxu0
        %v845 = vpop.f32.mrb[0].mxu0
        %v846 = vpop.f32.mrb[0].mxu0
        %847 = vdwg.mxu0
        %848 = vmatprep.subr.bf16.mxu0 0
        %849 = vmatpush1.bf16.msra.mxu0 %v768
        %850 = vmatprep.subr.bf16.mxu0 0
        %851 = vmatpush1.bf16.msra.mxu0 %v769
        %852 = vmatprep.subr.bf16.mxu0 0
        %853 = vmatpush1.bf16.msra.mxu0 %v770
        %854 = vmatprep.subr.bf16.mxu0 0
        %855 = vmatpush1.bf16.msra.mxu0 %v771
        %856 = vmatprep.subr.bf16.mxu0 0
        %857 = vmatpush1.bf16.msra.mxu0 %v772
        %858 = vmatprep.subr.bf16.mxu0 0
        %859 = vmatpush1.bf16.msra.mxu0 %v773
        %860 = vmatprep.subr.bf16.mxu0 0
        %861 = vmatpush1.bf16.msra.mxu0 %v774
        %862 = vmatprep.subr.bf16.mxu0 0
        %863 = vmatpush1.bf16.msra.mxu0 %v775
        %864 = vmatprep.subr.bf16.mxu0 0
        %865 = vmatpush1.bf16.msra.mxu0 0
        %866 = vmatprep.subr.bf16.mxu0 0
        %867 = vmatpush1.bf16.msra.mxu0 0
        %868 = vmatprep.subr.bf16.mxu0 0
        %869 = vmatpush1.bf16.msra.mxu0 0
        %870 = vmatprep.subr.bf16.mxu0 0
        %871 = vmatpush1.bf16.msra.mxu0 0
        %872 = vmatprep.subr.bf16.mxu0 0
        %873 = vmatpush1.bf16.msra.mxu0 0
        %874 = vmatprep.subr.bf16.mxu0 0
        %875 = vmatpush1.bf16.msra.mxu0 0
        %876 = vmatprep.subr.bf16.mxu0 0
        %877 = vmatpush1.bf16.msra.mxu0 0
        %878 = vmatprep.subr.bf16.mxu0 0
        %879 = vmatpush1.bf16.msra.mxu0 0
        %880 = vmatprep.mubr.bf16.mxu0 0
        %881 = vmatmul.mubr.bf16.gmra.mrb[0].mxu0 %v606
        %v882 = vpop.f32.mrb[0].mxu0
        %v883 = vadd.f32 %v835, %v882
        %v884 = vpop.f32.mrb[0].mxu0
        %v885 = vpop.f32.mrb[0].mxu0
        %v886 = vadd.f32 %v838, %v885
        %v887 = vpop.f32.mrb[0].mxu0
        %888 = vmatprep.mubr.bf16.mxu0 0
        %889 = vmatmul.mubr.bf16.gmra.mrb[0].mxu0 %v607
        %v890 = vpop.f32.mrb[0].mxu0
        %v891 = vadd.f32 %v843, %v890
        %v892 = vpop.f32.mrb[0].mxu0
        %v893 = vpop.f32.mrb[0].mxu0
        %v894 = vpop.f32.mrb[0].mxu0
        %895 = vdwg.mxu0
        %v896 = vmul.f32 %v883, %v190
        %v897 = vmul.f32 %v886, %v191
        %v898 = vmul.f32 %v891, %v192
        %v899 = vpack.c.bf16 %v897, %v896
        %v900 = vpack.c.bf16 %v898, %v898
        %v901 = vld [vmem:[#allocation2 + $0x180] sm:$0xf]
        %v902 = vld [vmem:[#allocation2 + $0x184] sm:$0xf]
        %v903 = vld [vmem:[#allocation2 + $0x188] sm:$0xf]
        %v904 = vld [vmem:[#allocation2 + $0x18c] sm:$0xf]
        %v905 = vld [vmem:[#allocation2 + $0x190] sm:$0xf]
        %v906 = vld [vmem:[#allocation2 + $0x194] sm:$0xf]
        %v907 = vld [vmem:[#allocation2 + $0x198] sm:$0xf]
        %v908 = vld [vmem:[#allocation2 + $0x19c] sm:$0xf]
        %v909 = vld [vmem:[#allocation2 + $0x1a0] sm:$0xf]
        %v910 = vld [vmem:[#allocation2 + $0x1a4] sm:$0xf]
        %v911 = vld [vmem:[#allocation2 + $0x1a8] sm:$0xf]
        %v912 = vld [vmem:[#allocation2 + $0x1ac] sm:$0xf]
        %v913 = vld [vmem:[#allocation2 + $0x1b0] sm:$0xf]
        %v914 = vld [vmem:[#allocation2 + $0x1b4] sm:$0xf]
        %v915 = vld [vmem:[#allocation2 + $0x1b8] sm:$0xf]
        %v916 = vld [vmem:[#allocation2 + $0x1bc] sm:$0xf]
        %v933 = vunpack.c.l.b16 %v901
        %v934 = vunpack.c.l.b16 %v902
        %v935 = vunpack.c.l.b16 %v903
        %v936 = vunpack.c.l.b16 %v904
        %v937 = vunpack.c.l.b16 %v905
        %v938 = vunpack.c.l.b16 %v906
        %v939 = vunpack.c.l.b16 %v907
        %v940 = vunpack.c.l.b16 %v908
        %v941 = vunpack.c.l.b16 %v909
        %v942 = vunpack.c.l.b16 %v910
        %v943 = vunpack.c.l.b16 %v911
        %v944 = vunpack.c.l.b16 %v912
        %v945 = vunpack.c.l.b16 %v913
        %v946 = vunpack.c.l.b16 %v914
        %v947 = vunpack.c.l.b16 %v915
        %v948 = vunpack.c.l.b16 %v916
        %v949 = vpack.c.b16 %v934, %v933
        %v950 = vpack.c.b16 %v936, %v935
        %v951 = vpack.c.b16 %v938, %v937
        %v952 = vpack.c.b16 %v940, %v939
        %v953 = vpack.c.b16 %v942, %v941
        %v954 = vpack.c.b16 %v944, %v943
        %v955 = vpack.c.b16 %v946, %v945
        %v956 = vpack.c.b16 %v948, %v947
        %965 = vmatprep.subr.bf16.mxu0 0
        %966 = vmatpush1.bf16.msra.mxu0 %v949
        %967 = vmatprep.subr.bf16.mxu0 0
        %968 = vmatpush1.bf16.msra.mxu0 %v950
        %969 = vmatprep.subr.bf16.mxu0 0
        %970 = vmatpush1.bf16.msra.mxu0 %v951
        %971 = vmatprep.subr.bf16.mxu0 0
        %972 = vmatpush1.bf16.msra.mxu0 %v952
        %973 = vmatprep.subr.bf16.mxu0 0
        %974 = vmatpush1.bf16.msra.mxu0 %v953
        %975 = vmatprep.subr.bf16.mxu0 0
        %976 = vmatpush1.bf16.msra.mxu0 %v954
        %977 = vmatprep.subr.bf16.mxu0 0
        %978 = vmatpush1.bf16.msra.mxu0 %v955
        %979 = vmatprep.subr.bf16.mxu0 0
        %980 = vmatpush1.bf16.msra.mxu0 %v956
        %981 = vmatprep.subr.bf16.mxu0 0
        %982 = vmatpush1.bf16.msra.mxu0 0
        %983 = vmatprep.subr.bf16.mxu0 0
        %984 = vmatpush1.bf16.msra.mxu0 0
        %985 = vmatprep.subr.bf16.mxu0 0
        %986 = vmatpush1.bf16.msra.mxu0 0
        %987 = vmatprep.subr.bf16.mxu0 0
        %988 = vmatpush1.bf16.msra.mxu0 0
        %989 = vmatprep.subr.bf16.mxu0 0
        %990 = vmatpush1.bf16.msra.mxu0 0
        %991 = vmatprep.subr.bf16.mxu0 0
        %992 = vmatpush1.bf16.msra.mxu0 0
        %993 = vmatprep.subr.bf16.mxu0 0
        %994 = vmatpush1.bf16.msra.mxu0 0
        %995 = vmatprep.subr.bf16.mxu0 0
        %996 = vmatpush1.bf16.msra.mxu0 0
        %997 = vmatprep.mubr.bf16.mxu0 0
        %998 = vmatmul.mubr.bf16.gmra.mrb[0].mxu0 %v899
        %v999 = vpop.f32.mrb[0].mxu0
        %v1000 = vadd.f32 0.0, %v999
        %v1001 = vpop.f32.mrb[0].mxu0
        %v1002 = vpop.f32.mrb[0].mxu0
        %v1003 = vadd.f32 0.0, %v1002
        %v1004 = vpop.f32.mrb[0].mxu0
        %1005 = vmatprep.mubr.bf16.mxu0 0
        %1006 = vmatmul.mubr.bf16.gmra.mrb[0].mxu0 %v900
        %v1007 = vpop.f32.mrb[0].mxu0
        %v1008 = vadd.f32 0.0, %v1007
        %v1009 = vpop.f32.mrb[0].mxu0
        %v1010 = vpop.f32.mrb[0].mxu0
        %v1011 = vpop.f32.mrb[0].mxu0
        %1012 = vdwg.mxu0
        %v1013 = vld [vmem:[#allocation2 + $0x1c0] sm:$0xf]
        %v1014 = vld [vmem:[#allocation2 + $0x1c4] sm:$0xf]
        %v1015 = vld [vmem:[#allocation2 + $0x1c8] sm:$0xf]
        %v1016 = vld [vmem:[#allocation2 + $0x1cc] sm:$0xf]
        %v1017 = vld [vmem:[#allocation2 + $0x1d0] sm:$0xf]
        %v1018 = vld [vmem:[#allocation2 + $0x1d4] sm:$0xf]
        %v1019 = vld [vmem:[#allocation2 + $0x1d8] sm:$0xf]
        %v1020 = vld [vmem:[#allocation2 + $0x1dc] sm:$0xf]
        %v1021 = vld [vmem:[#allocation2 + $0x1e0] sm:$0xf]
        %v1022 = vld [vmem:[#allocation2 + $0x1e4] sm:$0xf]
        %v1023 = vld [vmem:[#allocation2 + $0x1e8] sm:$0xf]
        %v1024 = vld [vmem:[#allocation2 + $0x1ec] sm:$0xf]
        %v1025 = vld [vmem:[#allocation2 + $0x1f0] sm:$0xf]
        %v1026 = vld [vmem:[#allocation2 + $0x1f4] sm:$0xf]
        %v1027 = vld [vmem:[#allocation2 + $0x1f8] sm:$0xf]
        %v1028 = vld [vmem:[#allocation2 + $0x1fc] sm:$0xf]
        %v1045 = vunpack.c.l.b16 %v1013
        %v1046 = vunpack.c.l.b16 %v1014
        %v1047 = vunpack.c.l.b16 %v1015
        %v1048 = vunpack.c.l.b16 %v1016
        %v1049 = vunpack.c.l.b16 %v1017
        %v1050 = vunpack.c.l.b16 %v1018
        %v1051 = vunpack.c.l.b16 %v1019
        %v1052 = vunpack.c.l.b16 %v1020
        %v1053 = vunpack.c.l.b16 %v1021
        %v1054 = vunpack.c.l.b16 %v1022
        %v1055 = vunpack.c.l.b16 %v1023
        %v1056 = vunpack.c.l.b16 %v1024
        %v1057 = vunpack.c.l.b16 %v1025
        %v1058 = vunpack.c.l.b16 %v1026
        %v1059 = vunpack.c.l.b16 %v1027
        %v1060 = vunpack.c.l.b16 %v1028
        %v1061 = vpack.c.b16 %v1046, %v1045
        %v1062 = vpack.c.b16 %v1048, %v1047
        %v1063 = vpack.c.b16 %v1050, %v1049
        %v1064 = vpack.c.b16 %v1052, %v1051
        %v1065 = vpack.c.b16 %v1054, %v1053
        %v1066 = vpack.c.b16 %v1056, %v1055
        %v1067 = vpack.c.b16 %v1058, %v1057
        %v1068 = vpack.c.b16 %v1060, %v1059
        %1077 = vmatprep.subr.bf16.mxu0 0
        %1078 = vmatpush1.bf16.msra.mxu0 %v1061
        %1079 = vmatprep.subr.bf16.mxu0 0
        %1080 = vmatpush1.bf16.msra.mxu0 %v1062
        %1081 = vmatprep.subr.bf16.mxu0 0
        %1082 = vmatpush1.bf16.msra.mxu0 %v1063
        %1083 = vmatprep.subr.bf16.mxu0 0
        %1084 = vmatpush1.bf16.msra.mxu0 %v1064
        %1085 = vmatprep.subr.bf16.mxu0 0
        %1086 = vmatpush1.bf16.msra.mxu0 %v1065
        %1087 = vmatprep.subr.bf16.mxu0 0
        %1088 = vmatpush1.bf16.msra.mxu0 %v1066
        %1089 = vmatprep.subr.bf16.mxu0 0
        %1090 = vmatpush1.bf16.msra.mxu0 %v1067
        %1091 = vmatprep.subr.bf16.mxu0 0
        %1092 = vmatpush1.bf16.msra.mxu0 %v1068
        %1093 = vmatprep.subr.bf16.mxu0 0
        %1094 = vmatpush1.bf16.msra.mxu0 0
        %1095 = vmatprep.subr.bf16.mxu0 0
        %1096 = vmatpush1.bf16.msra.mxu0 0
        %1097 = vmatprep.subr.bf16.mxu0 0
        %1098 = vmatpush1.bf16.msra.mxu0 0
        %1099 = vmatprep.subr.bf16.mxu0 0
        %1100 = vmatpush1.bf16.msra.mxu0 0
        %1101 = vmatprep.subr.bf16.mxu0 0
        %1102 = vmatpush1.bf16.msra.mxu0 0
        %1103 = vmatprep.subr.bf16.mxu0 0
        %1104 = vmatpush1.bf16.msra.mxu0 0
        %1105 = vmatprep.subr.bf16.mxu0 0
        %1106 = vmatpush1.bf16.msra.mxu0 0
        %1107 = vmatprep.subr.bf16.mxu0 0
        %1108 = vmatpush1.bf16.msra.mxu0 0
        %1109 = vmatprep.mubr.bf16.mxu0 0
        %1110 = vmatmul.mubr.bf16.gmra.mrb[0].mxu0 %v899
        %v1111 = vpop.f32.mrb[0].mxu0
        %v1112 = vadd.f32 0.0, %v1111
        %v1113 = vpop.f32.mrb[0].mxu0
        %v1114 = vpop.f32.mrb[0].mxu0
        %v1115 = vadd.f32 0.0, %v1114
        %v1116 = vpop.f32.mrb[0].mxu0
        %1117 = vmatprep.mubr.bf16.mxu0 0
        %1118 = vmatmul.mubr.bf16.gmra.mrb[0].mxu0 %v900
        %v1119 = vpop.f32.mrb[0].mxu0
        %v1120 = vadd.f32 0.0, %v1119
        %v1121 = vpop.f32.mrb[0].mxu0
        %v1122 = vpop.f32.mrb[0].mxu0
        %v1123 = vpop.f32.mrb[0].mxu0
        %1124 = vdwg.mxu0
        %v1125 = vmax.f32 %v1112, 0.0
        %v1126 = vmax.f32 %v1115, 0.0
        %v1127 = vmax.f32 %v1120, 0.0
        %v1128 = vrot.slane %v1125, 7
        %v1129 = vrot.slane %v1126, 7
        %v1130 = vrot.slane %v1127, 7
        %v1131 = vsel %vm201, %v1129, %v1130
        %v1132 = vsel %vm201, %v1128, %v1129
        %v1133 = vsel %vm201, %v1130, %v1128
        %v1134 = vpack.c.bf16 %v1132, %v1133
        %v1135 = vpack.c.bf16 %v1131, %v1131
        %v1136 = vpack.c.bf16 %v1126, %v1125
        %v1137 = vpack.c.bf16 %v1127, %v1127
        %v1138 = vrot.slane %v1125, 1
        %v1139 = vrot.slane %v1126, 1
        %v1140 = vrot.slane %v1127, 1
        %v1141 = vsel %vm212, %v1139, %v1140
        %v1142 = vsel %vm212, %v1138, %v1139
        %v1143 = vsel %vm212, %v1140, %v1138
        %v1144 = vpack.c.bf16 %v1141, %v1142
        %v1145 = vpack.c.bf16 %v1143, %v1143
        %v1146 = vld [vmem:[#allocation2 + $0x200] sm:$0xf]
        %v1147 = vld [vmem:[#allocation2 + $0x204] sm:$0xf]
        %v1148 = vld [vmem:[#allocation2 + $0x208] sm:$0xf]
        %v1149 = vld [vmem:[#allocation2 + $0x20c] sm:$0xf]
        %v1150 = vld [vmem:[#allocation2 + $0x210] sm:$0xf]
        %v1151 = vld [vmem:[#allocation2 + $0x214] sm:$0xf]
        %v1152 = vld [vmem:[#allocation2 + $0x218] sm:$0xf]
        %v1153 = vld [vmem:[#allocation2 + $0x21c] sm:$0xf]
        %v1154 = vld [vmem:[#allocation2 + $0x220] sm:$0xf]
        %v1155 = vld [vmem:[#allocation2 + $0x224] sm:$0xf]
        %v1156 = vld [vmem:[#allocation2 + $0x228] sm:$0xf]
        %v1157 = vld [vmem:[#allocation2 + $0x22c] sm:$0xf]
        %v1158 = vld [vmem:[#allocation2 + $0x230] sm:$0xf]
        %v1159 = vld [vmem:[#allocation2 + $0x234] sm:$0xf]
        %v1160 = vld [vmem:[#allocation2 + $0x238] sm:$0xf]
        %v1161 = vld [vmem:[#allocation2 + $0x23c] sm:$0xf]
        %v1162 = vld [vmem:[#allocation2 + $0x240] sm:$0xf]
        %v1163 = vld [vmem:[#allocation2 + $0x244] sm:$0xf]
        %v1164 = vld [vmem:[#allocation2 + $0x248] sm:$0xf]
        %v1165 = vld [vmem:[#allocation2 + $0x24c] sm:$0xf]
        %v1166 = vld [vmem:[#allocation2 + $0x250] sm:$0xf]
        %v1167 = vld [vmem:[#allocation2 + $0x254] sm:$0xf]
        %v1168 = vld [vmem:[#allocation2 + $0x258] sm:$0xf]
        %v1169 = vld [vmem:[#allocation2 + $0x25c] sm:$0xf]
        %v1170 = vld [vmem:[#allocation2 + $0x260] sm:$0xf]
        %v1171 = vld [vmem:[#allocation2 + $0x264] sm:$0xf]
        %v1172 = vld [vmem:[#allocation2 + $0x268] sm:$0xf]
        %v1173 = vld [vmem:[#allocation2 + $0x26c] sm:$0xf]
        %v1174 = vld [vmem:[#allocation2 + $0x270] sm:$0xf]
        %v1175 = vld [vmem:[#allocation2 + $0x274] sm:$0xf]
        %v1176 = vld [vmem:[#allocation2 + $0x278] sm:$0xf]
        %v1177 = vld [vmem:[#allocation2 + $0x27c] sm:$0xf]
        %v1178 = vld [vmem:[#allocation2 + $0x280] sm:$0xf]
        %v1179 = vld [vmem:[#allocation2 + $0x284] sm:$0xf]
        %v1180 = vld [vmem:[#allocation2 + $0x288] sm:$0xf]
        %v1181 = vld [vmem:[#allocation2 + $0x28c] sm:$0xf]
        %v1182 = vld [vmem:[#allocation2 + $0x290] sm:$0xf]
        %v1183 = vld [vmem:[#allocation2 + $0x294] sm:$0xf]
        %v1184 = vld [vmem:[#allocation2 + $0x298] sm:$0xf]
        %v1185 = vld [vmem:[#allocation2 + $0x29c] sm:$0xf]
        %v1186 = vld [vmem:[#allocation2 + $0x2a0] sm:$0xf]
        %v1187 = vld [vmem:[#allocation2 + $0x2a4] sm:$0xf]
        %v1188 = vld [vmem:[#allocation2 + $0x2a8] sm:$0xf]
        %v1189 = vld [vmem:[#allocation2 + $0x2ac] sm:$0xf]
        %v1190 = vld [vmem:[#allocation2 + $0x2b0] sm:$0xf]
        %v1191 = vld [vmem:[#allocation2 + $0x2b4] sm:$0xf]
        %v1192 = vld [vmem:[#allocation2 + $0x2b8] sm:$0xf]
        %v1193 = vld [vmem:[#allocation2 + $0x2bc] sm:$0xf]
        %v1242 = vunpack.c.l.b16 %v1146
        %v1243 = vunpack.c.l.b16 %v1147
        %v1244 = vunpack.c.l.b16 %v1148
        %v1245 = vunpack.c.l.b16 %v1149
        %v1246 = vunpack.c.l.b16 %v1150
        %v1247 = vunpack.c.l.b16 %v1151
        %v1248 = vunpack.c.l.b16 %v1152
        %v1249 = vunpack.c.l.b16 %v1153
        %v1250 = vunpack.c.l.b16 %v1154
        %v1251 = vunpack.c.l.b16 %v1155
        %v1252 = vunpack.c.l.b16 %v1156
        %v1253 = vunpack.c.l.b16 %v1157
        %v1254 = vunpack.c.l.b16 %v1158
        %v1255 = vunpack.c.l.b16 %v1159
        %v1256 = vunpack.c.l.b16 %v1160
        %v1257 = vunpack.c.l.b16 %v1161
        %v1258 = vunpack.c.l.b16 %v1162
        %v1259 = vunpack.c.l.b16 %v1163
        %v1260 = vunpack.c.l.b16 %v1164
        %v1261 = vunpack.c.l.b16 %v1165
        %v1262 = vunpack.c.l.b16 %v1166
        %v1263 = vunpack.c.l.b16 %v1167
        %v1264 = vunpack.c.l.b16 %v1168
        %v1265 = vunpack.c.l.b16 %v1169
        %v1266 = vunpack.c.l.b16 %v1170
        %v1267 = vunpack.c.l.b16 %v1171
        %v1268 = vunpack.c.l.b16 %v1172
        %v1269 = vunpack.c.l.b16 %v1173
        %v1270 = vunpack.c.l.b16 %v1174
        %v1271 = vunpack.c.l.b16 %v1175
        %v1272 = vunpack.c.l.b16 %v1176
        %v1273 = vunpack.c.l.b16 %v1177
        %v1274 = vunpack.c.l.b16 %v1178
        %v1275 = vunpack.c.l.b16 %v1179
        %v1276 = vunpack.c.l.b16 %v1180
        %v1277 = vunpack.c.l.b16 %v1181
        %v1278 = vunpack.c.l.b16 %v1182
        %v1279 = vunpack.c.l.b16 %v1183
        %v1280 = vunpack.c.l.b16 %v1184
        %v1281 = vunpack.c.l.b16 %v1185
        %v1282 = vunpack.c.l.b16 %v1186
        %v1283 = vunpack.c.l.b16 %v1187
        %v1284 = vunpack.c.l.b16 %v1188
        %v1285 = vunpack.c.l.b16 %v1189
        %v1286 = vunpack.c.l.b16 %v1190
        %v1287 = vunpack.c.l.b16 %v1191
        %v1288 = vunpack.c.l.b16 %v1192
        %v1289 = vunpack.c.l.b16 %v1193
        %v1290 = vpack.c.b16 %v1243, %v1242
        %v1291 = vpack.c.b16 %v1245, %v1244
        %v1292 = vpack.c.b16 %v1247, %v1246
        %v1293 = vpack.c.b16 %v1249, %v1248
        %v1294 = vpack.c.b16 %v1251, %v1250
        %v1295 = vpack.c.b16 %v1253, %v1252
        %v1296 = vpack.c.b16 %v1255, %v1254
        %v1297 = vpack.c.b16 %v1257, %v1256
        %v1298 = vpack.c.b16 %v1259, %v1258
        %v1299 = vpack.c.b16 %v1261, %v1260
        %v1300 = vpack.c.b16 %v1263, %v1262
        %v1301 = vpack.c.b16 %v1265, %v1264
        %v1302 = vpack.c.b16 %v1267, %v1266
        %v1303 = vpack.c.b16 %v1269, %v1268
        %v1304 = vpack.c.b16 %v1271, %v1270
        %v1305 = vpack.c.b16 %v1273, %v1272
        %v1306 = vpack.c.b16 %v1275, %v1274
        %v1307 = vpack.c.b16 %v1277, %v1276
        %v1308 = vpack.c.b16 %v1279, %v1278
        %v1309 = vpack.c.b16 %v1281, %v1280
        %v1310 = vpack.c.b16 %v1283, %v1282
        %v1311 = vpack.c.b16 %v1285, %v1284
        %v1312 = vpack.c.b16 %v1287, %v1286
        %v1313 = vpack.c.b16 %v1289, %v1288
        %1338 = vmatprep.subr.bf16.mxu0 0
        %1339 = vmatpush1.bf16.msra.mxu0 %v1290
        %1340 = vmatprep.subr.bf16.mxu0 0
        %1341 = vmatpush1.bf16.msra.mxu0 %v1291
        %1342 = vmatprep.subr.bf16.mxu0 0
        %1343 = vmatpush1.bf16.msra.mxu0 %v1292
        %1344 = vmatprep.subr.bf16.mxu0 0
        %1345 = vmatpush1.bf16.msra.mxu0 %v1293
        %1346 = vmatprep.subr.bf16.mxu0 0
        %1347 = vmatpush1.bf16.msra.mxu0 %v1294
        %1348 = vmatprep.subr.bf16.mxu0 0
        %1349 = vmatpush1.bf16.msra.mxu0 %v1295
        %1350 = vmatprep.subr.bf16.mxu0 0
        %1351 = vmatpush1.bf16.msra.mxu0 %v1296
        %1352 = vmatprep.subr.bf16.mxu0 0
        %1353 = vmatpush1.bf16.msra.mxu0 %v1297
        %1354 = vmatprep.subr.bf16.mxu0 0
        %1355 = vmatpush1.bf16.msra.mxu0 %v1298
        %1356 = vmatprep.subr.bf16.mxu0 0
        %1357 = vmatpush1.bf16.msra.mxu0 %v1299
        %1358 = vmatprep.subr.bf16.mxu0 0
        %1359 = vmatpush1.bf16.msra.mxu0 %v1300
        %1360 = vmatprep.subr.bf16.mxu0 0
        %1361 = vmatpush1.bf16.msra.mxu0 %v1301
        %1362 = vmatprep.subr.bf16.mxu0 0
        %1363 = vmatpush1.bf16.msra.mxu0 %v1302
        %1364 = vmatprep.subr.bf16.mxu0 0
        %1365 = vmatpush1.bf16.msra.mxu0 %v1303
        %1366 = vmatprep.subr.bf16.mxu0 0
        %1367 = vmatpush1.bf16.msra.mxu0 %v1304
        %1368 = vmatprep.subr.bf16.mxu0 0
        %1369 = vmatpush1.bf16.msra.mxu0 %v1305
        %1370 = vmatprep.mubr.bf16.mxu0 %v1136
        %1371 = vmatmul.mubr.bf16.gmra.mrb[0].mxu0 %v1134
        %v1372 = vpop.f32.mrb[0].mxu0
        %v1373 = vadd.f32 0.0, %v1372
        %v1374 = vpop.f32.mrb[0].mxu0
        %v1375 = vpop.f32.mrb[0].mxu0
        %v1376 = vadd.f32 0.0, %v1375
        %v1377 = vpop.f32.mrb[0].mxu0
        %1378 = vmatprep.mubr.bf16.mxu0 %v1137
        %1379 = vmatmul.mubr.bf16.gmra.mrb[0].mxu0 %v1135
        %v1380 = vpop.f32.mrb[0].mxu0
        %v1381 = vadd.f32 0.0, %v1380
        %v1382 = vpop.f32.mrb[0].mxu0
        %v1383 = vpop.f32.mrb[0].mxu0
        %v1384 = vpop.f32.mrb[0].mxu0
        %1385 = vdwg.mxu0
        %1386 = vmatprep.subr.bf16.mxu0 0
        %1387 = vmatpush1.bf16.msra.mxu0 %v1306
        %1388 = vmatprep.subr.bf16.mxu0 0
        %1389 = vmatpush1.bf16.msra.mxu0 %v1307
        %1390 = vmatprep.subr.bf16.mxu0 0
        %1391 = vmatpush1.bf16.msra.mxu0 %v1308
        %1392 = vmatprep.subr.bf16.mxu0 0
        %1393 = vmatpush1.bf16.msra.mxu0 %v1309
        %1394 = vmatprep.subr.bf16.mxu0 0
        %1395 = vmatpush1.bf16.msra.mxu0 %v1310
        %1396 = vmatprep.subr.bf16.mxu0 0
        %1397 = vmatpush1.bf16.msra.mxu0 %v1311
        %1398 = vmatprep.subr.bf16.mxu0 0
        %1399 = vmatpush1.bf16.msra.mxu0 %v1312
        %1400 = vmatprep.subr.bf16.mxu0 0
        %1401 = vmatpush1.bf16.msra.mxu0 %v1313
        %1402 = vmatprep.subr.bf16.mxu0 0
        %1403 = vmatpush1.bf16.msra.mxu0 0
        %1404 = vmatprep.subr.bf16.mxu0 0
        %1405 = vmatpush1.bf16.msra.mxu0 0
        %1406 = vmatprep.subr.bf16.mxu0 0
        %1407 = vmatpush1.bf16.msra.mxu0 0
        %1408 = vmatprep.subr.bf16.mxu0 0
        %1409 = vmatpush1.bf16.msra.mxu0 0
        %1410 = vmatprep.subr.bf16.mxu0 0
        %1411 = vmatpush1.bf16.msra.mxu0 0
        %1412 = vmatprep.subr.bf16.mxu0 0
        %1413 = vmatpush1.bf16.msra.mxu0 0
        %1414 = vmatprep.subr.bf16.mxu0 0
        %1415 = vmatpush1.bf16.msra.mxu0 0
        %1416 = vmatprep.subr.bf16.mxu0 0
        %1417 = vmatpush1.bf16.msra.mxu0 0
        %1418 = vmatprep.mubr.bf16.mxu0 0
        %1419 = vmatmul.mubr.bf16.gmra.mrb[0].mxu0 %v1144
        %v1420 = vpop.f32.mrb[0].mxu0
        %v1421 = vadd.f32 %v1373, %v1420
        %v1422 = vpop.f32.mrb[0].mxu0
        %v1423 = vpop.f32.mrb[0].mxu0
        %v1424 = vadd.f32 %v1376, %v1423
        %v1425 = vpop.f32.mrb[0].mxu0
        %1426 = vmatprep.mubr.bf16.mxu0 0
        %1427 = vmatmul.mubr.bf16.gmra.mrb[0].mxu0 %v1145
        %v1428 = vpop.f32.mrb[0].mxu0
        %v1429 = vadd.f32 %v1381, %v1428
        %v1430 = vpop.f32.mrb[0].mxu0
        %v1431 = vpop.f32.mrb[0].mxu0
        %v1432 = vpop.f32.mrb[0].mxu0
        %1433 = vdwg.mxu0
        %v1434 = vmul.f32 %v1421, %v190
        %v1435 = vmul.f32 %v1424, %v191
        %v1436 = vmul.f32 %v1429, %v192
        %v1437 = vadd.f32 %v1000, %v1434
        %v1438 = vadd.f32 %v1003, %v1435
        %v1439 = vadd.f32 %v1008, %v1436
        %v1440 = vmax.f32 %v1000, 0.0
        %v1441 = vmax.f32 %v1003, 0.0
        %v1442 = vmax.f32 %v1008, 0.0
        %v1443 = vpack.c.bf16 %v1441, %v1440
        %v1444 = vpack.c.bf16 %v1442, %v1442
        %v1445 = vld [vmem:[#allocation2 + $0x2c0] sm:$0xf]
        %v1446 = vld [vmem:[#allocation2 + $0x2c4] sm:$0xf]
        %v1447 = vld [vmem:[#allocation2 + $0x2c8] sm:$0xf]
        %v1448 = vld [vmem:[#allocation2 + $0x2cc] sm:$0xf]
        %v1449 = vld [vmem:[#allocation2 + $0x2d0] sm:$0xf]
        %v1450 = vld [vmem:[#allocation2 + $0x2d4] sm:$0xf]
        %v1451 = vld [vmem:[#allocation2 + $0x2d8] sm:$0xf]
        %v1452 = vld [vmem:[#allocation2 + $0x2dc] sm:$0xf]
        %v1453 = vld [vmem:[#allocation2 + $0x2e0] sm:$0xf]
        %v1454 = vld [vmem:[#allocation2 + $0x2e4] sm:$0xf]
        %v1455 = vld [vmem:[#allocation2 + $0x2e8] sm:$0xf]
        %v1456 = vld [vmem:[#allocation2 + $0x2ec] sm:$0xf]
        %v1457 = vld [vmem:[#allocation2 + $0x2f0] sm:$0xf]
        %v1458 = vld [vmem:[#allocation2 + $0x2f4] sm:$0xf]
        %v1459 = vld [vmem:[#allocation2 + $0x2f8] sm:$0xf]
        %v1460 = vld [vmem:[#allocation2 + $0x2fc] sm:$0xf]
        %v1477 = vunpack.c.l.b16 %v1445
        %v1478 = vunpack.c.l.b16 %v1446
        %v1479 = vunpack.c.l.b16 %v1447
        %v1480 = vunpack.c.l.b16 %v1448
        %v1481 = vunpack.c.l.b16 %v1449
        %v1482 = vunpack.c.l.b16 %v1450
        %v1483 = vunpack.c.l.b16 %v1451
        %v1484 = vunpack.c.l.b16 %v1452
        %v1485 = vunpack.c.l.b16 %v1453
        %v1486 = vunpack.c.l.b16 %v1454
        %v1487 = vunpack.c.l.b16 %v1455
        %v1488 = vunpack.c.l.b16 %v1456
        %v1489 = vunpack.c.l.b16 %v1457
        %v1490 = vunpack.c.l.b16 %v1458
        %v1491 = vunpack.c.l.b16 %v1459
        %v1492 = vunpack.c.l.b16 %v1460
        %v1493 = vpack.c.b16 %v1478, %v1477
        %v1494 = vpack.c.b16 %v1480, %v1479
        %v1495 = vpack.c.b16 %v1482, %v1481
        %v1496 = vpack.c.b16 %v1484, %v1483
        %v1497 = vpack.c.b16 %v1486, %v1485
        %v1498 = vpack.c.b16 %v1488, %v1487
        %v1499 = vpack.c.b16 %v1490, %v1489
        %v1500 = vpack.c.b16 %v1492, %v1491
        %1509 = vmatprep.subr.bf16.mxu0 0
        %1510 = vmatpush1.bf16.msra.mxu0 %v1493
        %1511 = vmatprep.subr.bf16.mxu0 0
        %1512 = vmatpush1.bf16.msra.mxu0 %v1494
        %1513 = vmatprep.subr.bf16.mxu0 0
        %1514 = vmatpush1.bf16.msra.mxu0 %v1495
        %1515 = vmatprep.subr.bf16.mxu0 0
        %1516 = vmatpush1.bf16.msra.mxu0 %v1496
        %1517 = vmatprep.subr.bf16.mxu0 0
        %1518 = vmatpush1.bf16.msra.mxu0 %v1497
        %1519 = vmatprep.subr.bf16.mxu0 0
        %1520 = vmatpush1.bf16.msra.mxu0 %v1498
        %1521 = vmatprep.subr.bf16.mxu0 0
        %1522 = vmatpush1.bf16.msra.mxu0 %v1499
        %1523 = vmatprep.subr.bf16.mxu0 0
        %1524 = vmatpush1.bf16.msra.mxu0 %v1500
        %1525 = vmatprep.subr.bf16.mxu0 0
        %1526 = vmatpush1.bf16.msra.mxu0 0
        %1527 = vmatprep.subr.bf16.mxu0 0
        %1528 = vmatpush1.bf16.msra.mxu0 0
        %1529 = vmatprep.subr.bf16.mxu0 0
        %1530 = vmatpush1.bf16.msra.mxu0 0
        %1531 = vmatprep.subr.bf16.mxu0 0
        %1532 = vmatpush1.bf16.msra.mxu0 0
        %1533 = vmatprep.subr.bf16.mxu0 0
        %1534 = vmatpush1.bf16.msra.mxu0 0
        %1535 = vmatprep.subr.bf16.mxu0 0
        %1536 = vmatpush1.bf16.msra.mxu0 0
        %1537 = vmatprep.subr.bf16.mxu0 0
        %1538 = vmatpush1.bf16.msra.mxu0 0
        %1539 = vmatprep.subr.bf16.mxu0 0
        %1540 = vmatpush1.bf16.msra.mxu0 0
        %1541 = vmatprep.mubr.bf16.mxu0 0
        %1542 = vmatmul.mubr.bf16.gmra.mrb[0].mxu0 %v1443
        %v1543 = vpop.f32.mrb[0].mxu0
        %v1544 = vadd.f32 %v1437, %v1543
        %v1545 = vpop.f32.mrb[0].mxu0
        %v1546 = vpop.f32.mrb[0].mxu0
        %v1547 = vadd.f32 %v1438, %v1546
        %v1548 = vpop.f32.mrb[0].mxu0
        %1549 = vmatprep.mubr.bf16.mxu0 0
        %1550 = vmatmul.mubr.bf16.gmra.mrb[0].mxu0 %v1444
        %v1551 = vpop.f32.mrb[0].mxu0
        %v1552 = vadd.f32 %v1439, %v1551
        %v1553 = vpop.f32.mrb[0].mxu0
        %v1554 = vpop.f32.mrb[0].mxu0
        %v1555 = vpop.f32.mrb[0].mxu0
        %1556 = vdwg.mxu0
        %v1557 = vld [vmem:[#allocation2 + $0x300] sm:$0xf]
        %v1558 = vld [vmem:[#allocation2 + $0x304] sm:$0xf]
        %v1559 = vld [vmem:[#allocation2 + $0x308] sm:$0xf]
        %v1560 = vld [vmem:[#allocation2 + $0x30c] sm:$0xf]
        %v1561 = vld [vmem:[#allocation2 + $0x310] sm:$0xf]
        %v1562 = vld [vmem:[#allocation2 + $0x314] sm:$0xf]
        %v1563 = vld [vmem:[#allocation2 + $0x318] sm:$0xf]
        %v1564 = vld [vmem:[#allocation2 + $0x31c] sm:$0xf]
        %v1565 = vld [vmem:[#allocation2 + $0x320] sm:$0xf]
        %v1566 = vld [vmem:[#allocation2 + $0x324] sm:$0xf]
        %v1567 = vld [vmem:[#allocation2 + $0x328] sm:$0xf]
        %v1568 = vld [vmem:[#allocation2 + $0x32c] sm:$0xf]
        %v1569 = vld [vmem:[#allocation2 + $0x330] sm:$0xf]
        %v1570 = vld [vmem:[#allocation2 + $0x334] sm:$0xf]
        %v1571 = vld [vmem:[#allocation2 + $0x338] sm:$0xf]
        %v1572 = vld [vmem:[#allocation2 + $0x33c] sm:$0xf]
        %v1589 = vunpack.c.l.b16 %v1557
        %v1590 = vunpack.c.l.b16 %v1558
        %v1591 = vunpack.c.l.b16 %v1559
        %v1592 = vunpack.c.l.b16 %v1560
        %v1593 = vunpack.c.l.b16 %v1561
        %v1594 = vunpack.c.l.b16 %v1562
        %v1595 = vunpack.c.l.b16 %v1563
        %v1596 = vunpack.c.l.b16 %v1564
        %v1597 = vunpack.c.l.b16 %v1565
        %v1598 = vunpack.c.l.b16 %v1566
        %v1599 = vunpack.c.l.b16 %v1567
        %v1600 = vunpack.c.l.b16 %v1568
        %v1601 = vunpack.c.l.b16 %v1569
        %v1602 = vunpack.c.l.b16 %v1570
        %v1603 = vunpack.c.l.b16 %v1571
        %v1604 = vunpack.c.l.b16 %v1572
        %v1605 = vpack.c.b16 %v1590, %v1589
        %v1606 = vpack.c.b16 %v1592, %v1591
        %v1607 = vpack.c.b16 %v1594, %v1593
        %v1608 = vpack.c.b16 %v1596, %v1595
        %v1609 = vpack.c.b16 %v1598, %v1597
        %v1610 = vpack.c.b16 %v1600, %v1599
        %v1611 = vpack.c.b16 %v1602, %v1601
        %v1612 = vpack.c.b16 %v1604, %v1603
        %1621 = vmatprep.subr.bf16.mxu0 0
        %1622 = vmatpush1.bf16.msra.mxu0 %v1605
        %1623 = vmatprep.subr.bf16.mxu0 0
        %1624 = vmatpush1.bf16.msra.mxu0 %v1606
        %1625 = vmatprep.subr.bf16.mxu0 0
        %1626 = vmatpush1.bf16.msra.mxu0 %v1607
        %1627 = vmatprep.subr.bf16.mxu0 0
        %1628 = vmatpush1.bf16.msra.mxu0 %v1608
        %1629 = vmatprep.subr.bf16.mxu0 0
        %1630 = vmatpush1.bf16.msra.mxu0 %v1609
        %1631 = vmatprep.subr.bf16.mxu0 0
        %1632 = vmatpush1.bf16.msra.mxu0 %v1610
        %1633 = vmatprep.subr.bf16.mxu0 0
        %1634 = vmatpush1.bf16.msra.mxu0 %v1611
        %1635 = vmatprep.subr.bf16.mxu0 0
        %1636 = vmatpush1.bf16.msra.mxu0 %v1612
        %1637 = vmatprep.subr.bf16.mxu0 0
        %1638 = vmatpush1.bf16.msra.mxu0 0
        %1639 = vmatprep.subr.bf16.mxu0 0
        %1640 = vmatpush1.bf16.msra.mxu0 0
        %1641 = vmatprep.subr.bf16.mxu0 0
        %1642 = vmatpush1.bf16.msra.mxu0 0
        %1643 = vmatprep.subr.bf16.mxu0 0
        %1644 = vmatpush1.bf16.msra.mxu0 0
        %1645 = vmatprep.subr.bf16.mxu0 0
        %1646 = vmatpush1.bf16.msra.mxu0 0
        %1647 = vmatprep.subr.bf16.mxu0 0
        %1648 = vmatpush1.bf16.msra.mxu0 0
        %1649 = vmatprep.subr.bf16.mxu0 0
        %1650 = vmatpush1.bf16.msra.mxu0 0
        %1651 = vmatprep.subr.bf16.mxu0 0
        %1652 = vmatpush1.bf16.msra.mxu0 0
        %1653 = vmatprep.mubr.bf16.mxu0 0
        %1654 = vmatmul.mubr.bf16.gmra.mrb[0].mxu0 %v899
        %v1655 = vpop.f32.mrb[0].mxu0
        %v1656 = vadd.f32 0.0, %v1655
        %v1657 = vpop.f32.mrb[0].mxu0
        %v1658 = vpop.f32.mrb[0].mxu0
        %v1659 = vadd.f32 0.0, %v1658
        %v1660 = vpop.f32.mrb[0].mxu0
        %1661 = vmatprep.mubr.bf16.mxu0 0
        %1662 = vmatmul.mubr.bf16.gmra.mrb[0].mxu0 %v900
        %v1663 = vpop.f32.mrb[0].mxu0
        %v1664 = vadd.f32 0.0, %v1663
        %v1665 = vpop.f32.mrb[0].mxu0
        %v1666 = vpop.f32.mrb[0].mxu0
        %v1667 = vpop.f32.mrb[0].mxu0
        %1668 = vdwg.mxu0
        %v1669 = vpack.c.bf16 %v1438, %v1437
        %v1670 = vpack.c.bf16 %v1439, %v1439
        %v1671 = vpack.c.bf16 %v1547, %v1544
        %v1672 = vpack.c.bf16 %v1552, %v1552
        %v1673 = vld [vmem:[#allocation2 + $0x340] sm:$0xf]
        %v1674 = vld [vmem:[#allocation2 + $0x344] sm:$0xf]
        %v1675 = vld [vmem:[#allocation2 + $0x348] sm:$0xf]
        %v1676 = vld [vmem:[#allocation2 + $0x34c] sm:$0xf]
        %v1677 = vld [vmem:[#allocation2 + $0x350] sm:$0xf]
        %v1678 = vld [vmem:[#allocation2 + $0x354] sm:$0xf]
        %v1679 = vld [vmem:[#allocation2 + $0x358] sm:$0xf]
        %v1680 = vld [vmem:[#allocation2 + $0x35c] sm:$0xf]
        %v1681 = vld [vmem:[#allocation2 + $0x360] sm:$0xf]
        %v1682 = vld [vmem:[#allocation2 + $0x364] sm:$0xf]
        %v1683 = vld [vmem:[#allocation2 + $0x368] sm:$0xf]
        %v1684 = vld [vmem:[#allocation2 + $0x36c] sm:$0xf]
        %v1685 = vld [vmem:[#allocation2 + $0x370] sm:$0xf]
        %v1686 = vld [vmem:[#allocation2 + $0x374] sm:$0xf]
        %v1687 = vld [vmem:[#allocation2 + $0x378] sm:$0xf]
        %v1688 = vld [vmem:[#allocation2 + $0x37c] sm:$0xf]
        %v1689 = vld [vmem:[#allocation2 + $0x380] sm:$0xf]
        %v1690 = vld [vmem:[#allocation2 + $0x384] sm:$0xf]
        %v1691 = vld [vmem:[#allocation2 + $0x388] sm:$0xf]
        %v1692 = vld [vmem:[#allocation2 + $0x38c] sm:$0xf]
        %v1693 = vld [vmem:[#allocation2 + $0x390] sm:$0xf]
        %v1694 = vld [vmem:[#allocation2 + $0x394] sm:$0xf]
        %v1695 = vld [vmem:[#allocation2 + $0x398] sm:$0xf]
        %v1696 = vld [vmem:[#allocation2 + $0x39c] sm:$0xf]
        %v1697 = vld [vmem:[#allocation2 + $0x3a0] sm:$0xf]
        %v1698 = vld [vmem:[#allocation2 + $0x3a4] sm:$0xf]
        %v1699 = vld [vmem:[#allocation2 + $0x3a8] sm:$0xf]
        %v1700 = vld [vmem:[#allocation2 + $0x3ac] sm:$0xf]
        %v1701 = vld [vmem:[#allocation2 + $0x3b0] sm:$0xf]
        %v1702 = vld [vmem:[#allocation2 + $0x3b4] sm:$0xf]
        %v1703 = vld [vmem:[#allocation2 + $0x3b8] sm:$0xf]
        %v1704 = vld [vmem:[#allocation2 + $0x3bc] sm:$0xf]
        %v1737 = vunpack.c.l.b16 %v1673
        %v1738 = vunpack.c.l.b16 %v1674
        %v1739 = vunpack.c.l.b16 %v1675
        %v1740 = vunpack.c.l.b16 %v1676
        %v1741 = vunpack.c.l.b16 %v1677
        %v1742 = vunpack.c.l.b16 %v1678
        %v1743 = vunpack.c.l.b16 %v1679
        %v1744 = vunpack.c.l.b16 %v1680
        %v1745 = vunpack.c.l.b16 %v1681
        %v1746 = vunpack.c.l.b16 %v1682
        %v1747 = vunpack.c.l.b16 %v1683
        %v1748 = vunpack.c.l.b16 %v1684
        %v1749 = vunpack.c.l.b16 %v1685
        %v1750 = vunpack.c.l.b16 %v1686
        %v1751 = vunpack.c.l.b16 %v1687
        %v1752 = vunpack.c.l.b16 %v1688
        %v1753 = vunpack.c.l.b16 %v1689
        %v1754 = vunpack.c.l.b16 %v1690
        %v1755 = vunpack.c.l.b16 %v1691
        %v1756 = vunpack.c.l.b16 %v1692
        %v1757 = vunpack.c.l.b16 %v1693
        %v1758 = vunpack.c.l.b16 %v1694
        %v1759 = vunpack.c.l.b16 %v1695
        %v1760 = vunpack.c.l.b16 %v1696
        %v1761 = vunpack.c.l.b16 %v1697
        %v1762 = vunpack.c.l.b16 %v1698
        %v1763 = vunpack.c.l.b16 %v1699
        %v1764 = vunpack.c.l.b16 %v1700
        %v1765 = vunpack.c.l.b16 %v1701
        %v1766 = vunpack.c.l.b16 %v1702
        %v1767 = vunpack.c.l.b16 %v1703
        %v1768 = vunpack.c.l.b16 %v1704
        %v1769 = vpack.c.b16 %v1738, %v1737
        %v1770 = vpack.c.b16 %v1740, %v1739
        %v1771 = vpack.c.b16 %v1742, %v1741
        %v1772 = vpack.c.b16 %v1744, %v1743
        %v1773 = vpack.c.b16 %v1746, %v1745
        %v1774 = vpack.c.b16 %v1748, %v1747
        %v1775 = vpack.c.b16 %v1750, %v1749
        %v1776 = vpack.c.b16 %v1752, %v1751
        %v1777 = vpack.c.b16 %v1754, %v1753
        %v1778 = vpack.c.b16 %v1756, %v1755
        %v1779 = vpack.c.b16 %v1758, %v1757
        %v1780 = vpack.c.b16 %v1760, %v1759
        %v1781 = vpack.c.b16 %v1762, %v1761
        %v1782 = vpack.c.b16 %v1764, %v1763
        %v1783 = vpack.c.b16 %v1766, %v1765
        %v1784 = vpack.c.b16 %v1768, %v1767
        %1801 = vmatprep.subr.bf16.mxu0 0
        %1802 = vmatpush1.bf16.msra.mxu0 %v1769
        %1803 = vmatprep.subr.bf16.mxu0 0
        %1804 = vmatpush1.bf16.msra.mxu0 %v1770
        %1805 = vmatprep.subr.bf16.mxu0 0
        %1806 = vmatpush1.bf16.msra.mxu0 %v1771
        %1807 = vmatprep.subr.bf16.mxu0 0
        %1808 = vmatpush1.bf16.msra.mxu0 %v1772
        %1809 = vmatprep.subr.bf16.mxu0 0
        %1810 = vmatpush1.bf16.msra.mxu0 %v1773
        %1811 = vmatprep.subr.bf16.mxu0 0
        %1812 = vmatpush1.bf16.msra.mxu0 %v1774
        %1813 = vmatprep.subr.bf16.mxu0 0
        %1814 = vmatpush1.bf16.msra.mxu0 %v1775
        %1815 = vmatprep.subr.bf16.mxu0 0
        %1816 = vmatpush1.bf16.msra.mxu0 %v1776
        %1817 = vmatprep.subr.bf16.mxu0 0
        %1818 = vmatpush1.bf16.msra.mxu0 %v1777
        %1819 = vmatprep.subr.bf16.mxu0 0
        %1820 = vmatpush1.bf16.msra.mxu0 %v1778
        %1821 = vmatprep.subr.bf16.mxu0 0
        %1822 = vmatpush1.bf16.msra.mxu0 %v1779
        %1823 = vmatprep.subr.bf16.mxu0 0
        %1824 = vmatpush1.bf16.msra.mxu0 %v1780
        %1825 = vmatprep.subr.bf16.mxu0 0
        %1826 = vmatpush1.bf16.msra.mxu0 %v1781
        %1827 = vmatprep.subr.bf16.mxu0 0
        %1828 = vmatpush1.bf16.msra.mxu0 %v1782
        %1829 = vmatprep.subr.bf16.mxu0 0
        %1830 = vmatpush1.bf16.msra.mxu0 %v1783
        %1831 = vmatprep.subr.bf16.mxu0 0
        %1832 = vmatpush1.bf16.msra.mxu0 %v1784
        %1833 = vmatprep.mubr.bf16.mxu0 %v1671
        %1834 = vmatmul.mubr.bf16.gmra.mrb[0].mxu0 %v1669
        %v1835 = vpop.f32.mrb[0].mxu0
        %v1836 = vadd.f32 0.0, %v1835
        %v1837 = vpop.f32.mrb[0].mxu0
        %v1838 = vpop.f32.mrb[0].mxu0
        %v1839 = vadd.f32 0.0, %v1838
        %v1840 = vpop.f32.mrb[0].mxu0
        %1841 = vmatprep.mubr.bf16.mxu0 %v1672
        %1842 = vmatmul.mubr.bf16.gmra.mrb[0].mxu0 %v1670
        %v1843 = vpop.f32.mrb[0].mxu0
        %v1844 = vadd.f32 0.0, %v1843
        %v1845 = vpop.f32.mrb[0].mxu0
        %v1846 = vpop.f32.mrb[0].mxu0
        %v1847 = vpop.f32.mrb[0].mxu0
        %1848 = vdwg.mxu0
        %v1849 = vmax.f32 %v1836, 0.0
        %v1850 = vmax.f32 %v1839, 0.0
        %v1851 = vmax.f32 %v1844, 0.0
        %v1852 = vrot.slane %v1849, 7
        %v1853 = vrot.slane %v1850, 7
        %v1854 = vrot.slane %v1851, 7
        %v1855 = vsel %vm201, %v1853, %v1854
        %v1856 = vsel %vm201, %v1852, %v1853
        %v1857 = vsel %vm201, %v1854, %v1852
        %v1858 = vpack.c.bf16 %v1856, %v1857
        %v1859 = vpack.c.bf16 %v1855, %v1855
        %v1860 = vpack.c.bf16 %v1850, %v1849
        %v1861 = vpack.c.bf16 %v1851, %v1851
        %v1862 = vrot.slane %v1849, 1
        %v1863 = vrot.slane %v1850, 1
        %v1864 = vrot.slane %v1851, 1
        %v1865 = vsel %vm212, %v1863, %v1864
        %v1866 = vsel %vm212, %v1862, %v1863
        %v1867 = vsel %vm212, %v1864, %v1862
        %v1868 = vpack.c.bf16 %v1865, %v1866
        %v1869 = vpack.c.bf16 %v1867, %v1867
        %v1870 = vld [vmem:[#allocation2 + $0x3c0] sm:$0xf]
        %v1871 = vld [vmem:[#allocation2 + $0x3c4] sm:$0xf]
        %v1872 = vld [vmem:[#allocation2 + $0x3c8] sm:$0xf]
        %v1873 = vld [vmem:[#allocation2 + $0x3cc] sm:$0xf]
        %v1874 = vld [vmem:[#allocation2 + $0x3d0] sm:$0xf]
        %v1875 = vld [vmem:[#allocation2 + $0x3d4] sm:$0xf]
        %v1876 = vld [vmem:[#allocation2 + $0x3d8] sm:$0xf]
        %v1877 = vld [vmem:[#allocation2 + $0x3dc] sm:$0xf]
        %v1878 = vld [vmem:[#allocation2 + $0x3e0] sm:$0xf]
        %v1879 = vld [vmem:[#allocation2 + $0x3e4] sm:$0xf]
        %v1880 = vld [vmem:[#allocation2 + $0x3e8] sm:$0xf]
        %v1881 = vld [vmem:[#allocation2 + $0x3ec] sm:$0xf]
        %v1882 = vld [vmem:[#allocation2 + $0x3f0] sm:$0xf]
        %v1883 = vld [vmem:[#allocation2 + $0x3f4] sm:$0xf]
        %v1884 = vld [vmem:[#allocation2 + $0x3f8] sm:$0xf]
        %v1885 = vld [vmem:[#allocation2 + $0x3fc] sm:$0xf]
        %v1886 = vld [vmem:[#allocation2 + $0x400] sm:$0xf]
        %v1887 = vld [vmem:[#allocation2 + $0x404] sm:$0xf]
        %v1888 = vld [vmem:[#allocation2 + $0x408] sm:$0xf]
        %v1889 = vld [vmem:[#allocation2 + $0x40c] sm:$0xf]
        %v1890 = vld [vmem:[#allocation2 + $0x410] sm:$0xf]
        %v1891 = vld [vmem:[#allocation2 + $0x414] sm:$0xf]
        %v1892 = vld [vmem:[#allocation2 + $0x418] sm:$0xf]
        %v1893 = vld [vmem:[#allocation2 + $0x41c] sm:$0xf]
        %v1894 = vld [vmem:[#allocation2 + $0x420] sm:$0xf]
        %v1895 = vld [vmem:[#allocation2 + $0x424] sm:$0xf]
        %v1896 = vld [vmem:[#allocation2 + $0x428] sm:$0xf]
        %v1897 = vld [vmem:[#allocation2 + $0x42c] sm:$0xf]
        %v1898 = vld [vmem:[#allocation2 + $0x430] sm:$0xf]
        %v1899 = vld [vmem:[#allocation2 + $0x434] sm:$0xf]
        %v1900 = vld [vmem:[#allocation2 + $0x438] sm:$0xf]
        %v1901 = vld [vmem:[#allocation2 + $0x43c] sm:$0xf]
        %v1902 = vld [vmem:[#allocation2 + $0x440] sm:$0xf]
        %v1903 = vld [vmem:[#allocation2 + $0x444] sm:$0xf]
        %v1904 = vld [vmem:[#allocation2 + $0x448] sm:$0xf]
        %v1905 = vld [vmem:[#allocation2 + $0x44c] sm:$0xf]
        %v1906 = vld [vmem:[#allocation2 + $0x450] sm:$0xf]
        %v1907 = vld [vmem:[#allocation2 + $0x454] sm:$0xf]
        %v1908 = vld [vmem:[#allocation2 + $0x458] sm:$0xf]
        %v1909 = vld [vmem:[#allocation2 + $0x45c] sm:$0xf]
        %v1910 = vld [vmem:[#allocation2 + $0x460] sm:$0xf]
        %v1911 = vld [vmem:[#allocation2 + $0x464] sm:$0xf]
        %v1912 = vld [vmem:[#allocation2 + $0x468] sm:$0xf]
        %v1913 = vld [vmem:[#allocation2 + $0x46c] sm:$0xf]
        %v1914 = vld [vmem:[#allocation2 + $0x470] sm:$0xf]
        %v1915 = vld [vmem:[#allocation2 + $0x474] sm:$0xf]
        %v1916 = vld [vmem:[#allocation2 + $0x478] sm:$0xf]
        %v1917 = vld [vmem:[#allocation2 + $0x47c] sm:$0xf]
        %v1966 = vunpack.c.l.b16 %v1870
        %v1967 = vunpack.c.l.b16 %v1871
        %v1968 = vunpack.c.l.b16 %v1872
        %v1969 = vunpack.c.l.b16 %v1873
        %v1970 = vunpack.c.l.b16 %v1874
        %v1971 = vunpack.c.l.b16 %v1875
        %v1972 = vunpack.c.l.b16 %v1876
        %v1973 = vunpack.c.l.b16 %v1877
        %v1974 = vunpack.c.l.b16 %v1878
        %v1975 = vunpack.c.l.b16 %v1879
        %v1976 = vunpack.c.l.b16 %v1880
        %v1977 = vunpack.c.l.b16 %v1881
        %v1978 = vunpack.c.l.b16 %v1882
        %v1979 = vunpack.c.l.b16 %v1883
        %v1980 = vunpack.c.l.b16 %v1884
        %v1981 = vunpack.c.l.b16 %v1885
        %v1982 = vunpack.c.l.b16 %v1886
        %v1983 = vunpack.c.l.b16 %v1887
        %v1984 = vunpack.c.l.b16 %v1888
        %v1985 = vunpack.c.l.b16 %v1889
        %v1986 = vunpack.c.l.b16 %v1890
        %v1987 = vunpack.c.l.b16 %v1891
        %v1988 = vunpack.c.l.b16 %v1892
        %v1989 = vunpack.c.l.b16 %v1893
        %v1990 = vunpack.c.l.b16 %v1894
        %v1991 = vunpack.c.l.b16 %v1895
        %v1992 = vunpack.c.l.b16 %v1896
        %v1993 = vunpack.c.l.b16 %v1897
        %v1994 = vunpack.c.l.b16 %v1898
        %v1995 = vunpack.c.l.b16 %v1899
        %v1996 = vunpack.c.l.b16 %v1900
        %v1997 = vunpack.c.l.b16 %v1901
        %v1998 = vunpack.c.l.b16 %v1902
        %v1999 = vunpack.c.l.b16 %v1903
        %v2000 = vunpack.c.l.b16 %v1904
        %v2001 = vunpack.c.l.b16 %v1905
        %v2002 = vunpack.c.l.b16 %v1906
        %v2003 = vunpack.c.l.b16 %v1907
        %v2004 = vunpack.c.l.b16 %v1908
        %v2005 = vunpack.c.l.b16 %v1909
        %v2006 = vunpack.c.l.b16 %v1910
        %v2007 = vunpack.c.l.b16 %v1911
        %v2008 = vunpack.c.l.b16 %v1912
        %v2009 = vunpack.c.l.b16 %v1913
        %v2010 = vunpack.c.l.b16 %v1914
        %v2011 = vunpack.c.l.b16 %v1915
        %v2012 = vunpack.c.l.b16 %v1916
        %v2013 = vunpack.c.l.b16 %v1917
        %v2014 = vpack.c.b16 %v1967, %v1966
        %v2015 = vpack.c.b16 %v1969, %v1968
        %v2016 = vpack.c.b16 %v1971, %v1970
        %v2017 = vpack.c.b16 %v1973, %v1972
        %v2018 = vpack.c.b16 %v1975, %v1974
        %v2019 = vpack.c.b16 %v1977, %v1976
        %v2020 = vpack.c.b16 %v1979, %v1978
        %v2021 = vpack.c.b16 %v1981, %v1980
        %v2022 = vpack.c.b16 %v1983, %v1982
        %v2023 = vpack.c.b16 %v1985, %v1984
        %v2024 = vpack.c.b16 %v1987, %v1986
        %v2025 = vpack.c.b16 %v1989, %v1988
        %v2026 = vpack.c.b16 %v1991, %v1990
        %v2027 = vpack.c.b16 %v1993, %v1992
        %v2028 = vpack.c.b16 %v1995, %v1994
        %v2029 = vpack.c.b16 %v1997, %v1996
        %v2030 = vpack.c.b16 %v1999, %v1998
        %v2031 = vpack.c.b16 %v2001, %v2000
        %v2032 = vpack.c.b16 %v2003, %v2002
        %v2033 = vpack.c.b16 %v2005, %v2004
        %v2034 = vpack.c.b16 %v2007, %v2006
        %v2035 = vpack.c.b16 %v2009, %v2008
        %v2036 = vpack.c.b16 %v2011, %v2010
        %v2037 = vpack.c.b16 %v2013, %v2012
        %2062 = vmatprep.subr.bf16.mxu0 0
        %2063 = vmatpush1.bf16.msra.mxu0 %v2014
        %2064 = vmatprep.subr.bf16.mxu0 0
        %2065 = vmatpush1.bf16.msra.mxu0 %v2015
        %2066 = vmatprep.subr.bf16.mxu0 0
        %2067 = vmatpush1.bf16.msra.mxu0 %v2016
        %2068 = vmatprep.subr.bf16.mxu0 0
        %2069 = vmatpush1.bf16.msra.mxu0 %v2017
        %2070 = vmatprep.subr.bf16.mxu0 0
        %2071 = vmatpush1.bf16.msra.mxu0 %v2018
        %2072 = vmatprep.subr.bf16.mxu0 0
        %2073 = vmatpush1.bf16.msra.mxu0 %v2019
        %2074 = vmatprep.subr.bf16.mxu0 0
        %2075 = vmatpush1.bf16.msra.mxu0 %v2020
        %2076 = vmatprep.subr.bf16.mxu0 0
        %2077 = vmatpush1.bf16.msra.mxu0 %v2021
        %2078 = vmatprep.subr.bf16.mxu0 0
        %2079 = vmatpush1.bf16.msra.mxu0 %v2022
        %2080 = vmatprep.subr.bf16.mxu0 0
        %2081 = vmatpush1.bf16.msra.mxu0 %v2023
        %2082 = vmatprep.subr.bf16.mxu0 0
        %2083 = vmatpush1.bf16.msra.mxu0 %v2024
        %2084 = vmatprep.subr.bf16.mxu0 0
        %2085 = vmatpush1.bf16.msra.mxu0 %v2025
        %2086 = vmatprep.subr.bf16.mxu0 0
        %2087 = vmatpush1.bf16.msra.mxu0 %v2026
        %2088 = vmatprep.subr.bf16.mxu0 0
        %2089 = vmatpush1.bf16.msra.mxu0 %v2027
        %2090 = vmatprep.subr.bf16.mxu0 0
        %2091 = vmatpush1.bf16.msra.mxu0 %v2028
        %2092 = vmatprep.subr.bf16.mxu0 0
        %2093 = vmatpush1.bf16.msra.mxu0 %v2029
        %2094 = vmatprep.mubr.bf16.mxu0 %v1860
        %2095 = vmatmul.mubr.bf16.gmra.mrb[0].mxu0 %v1858
        %v2096 = vpop.f32.mrb[0].mxu0
        %v2097 = vadd.f32 0.0, %v2096
        %v2098 = vpop.f32.mrb[0].mxu0
        %v2099 = vpop.f32.mrb[0].mxu0
        %v2100 = vadd.f32 0.0, %v2099
        %v2101 = vpop.f32.mrb[0].mxu0
        %2102 = vmatprep.mubr.bf16.mxu0 %v1861
        %2103 = vmatmul.mubr.bf16.gmra.mrb[0].mxu0 %v1859
        %v2104 = vpop.f32.mrb[0].mxu0
        %v2105 = vadd.f32 0.0, %v2104
        %v2106 = vpop.f32.mrb[0].mxu0
        %v2107 = vpop.f32.mrb[0].mxu0
        %v2108 = vpop.f32.mrb[0].mxu0
        %2109 = vdwg.mxu0
        %2110 = vmatprep.subr.bf16.mxu0 0
        %2111 = vmatpush1.bf16.msra.mxu0 %v2030
        %2112 = vmatprep.subr.bf16.mxu0 0
        %2113 = vmatpush1.bf16.msra.mxu0 %v2031
        %2114 = vmatprep.subr.bf16.mxu0 0
        %2115 = vmatpush1.bf16.msra.mxu0 %v2032
        %2116 = vmatprep.subr.bf16.mxu0 0
        %2117 = vmatpush1.bf16.msra.mxu0 %v2033
        %2118 = vmatprep.subr.bf16.mxu0 0
        %2119 = vmatpush1.bf16.msra.mxu0 %v2034
        %2120 = vmatprep.subr.bf16.mxu0 0
        %2121 = vmatpush1.bf16.msra.mxu0 %v2035
        %2122 = vmatprep.subr.bf16.mxu0 0
        %2123 = vmatpush1.bf16.msra.mxu0 %v2036
        %2124 = vmatprep.subr.bf16.mxu0 0
        %2125 = vmatpush1.bf16.msra.mxu0 %v2037
        %2126 = vmatprep.subr.bf16.mxu0 0
        %2127 = vmatpush1.bf16.msra.mxu0 0
        %2128 = vmatprep.subr.bf16.mxu0 0
        %2129 = vmatpush1.bf16.msra.mxu0 0
        %2130 = vmatprep.subr.bf16.mxu0 0
        %2131 = vmatpush1.bf16.msra.mxu0 0
        %2132 = vmatprep.subr.bf16.mxu0 0
        %2133 = vmatpush1.bf16.msra.mxu0 0
        %2134 = vmatprep.subr.bf16.mxu0 0
        %2135 = vmatpush1.bf16.msra.mxu0 0
        %2136 = vmatprep.subr.bf16.mxu0 0
        %2137 = vmatpush1.bf16.msra.mxu0 0
        %2138 = vmatprep.subr.bf16.mxu0 0
        %2139 = vmatpush1.bf16.msra.mxu0 0
        %2140 = vmatprep.subr.bf16.mxu0 0
        %2141 = vmatpush1.bf16.msra.mxu0 0
        %2142 = vmatprep.mubr.bf16.mxu0 0
        %2143 = vmatmul.mubr.bf16.gmra.mrb[0].mxu0 %v1868
        %v2144 = vpop.f32.mrb[0].mxu0
        %v2145 = vadd.f32 %v2097, %v2144
        %v2146 = vpop.f32.mrb[0].mxu0
        %v2147 = vpop.f32.mrb[0].mxu0
        %v2148 = vadd.f32 %v2100, %v2147
        %v2149 = vpop.f32.mrb[0].mxu0
        %2150 = vmatprep.mubr.bf16.mxu0 0
        %2151 = vmatmul.mubr.bf16.gmra.mrb[0].mxu0 %v1869
        %v2152 = vpop.f32.mrb[0].mxu0
        %v2153 = vadd.f32 %v2105, %v2152
        %v2154 = vpop.f32.mrb[0].mxu0
        %v2155 = vpop.f32.mrb[0].mxu0
        %v2156 = vpop.f32.mrb[0].mxu0
        %2157 = vdwg.mxu0
        %v2158 = vmul.f32 %v2145, %v190
        %v2159 = vmul.f32 %v2148, %v191
        %v2160 = vmul.f32 %v2153, %v192
        %v2161 = vadd.f32 %v1656, %v2158
        %v2162 = vadd.f32 %v1659, %v2159
        %v2163 = vadd.f32 %v1664, %v2160
        %v2164 = vmax.f32 %v1656, 0.0
        %v2165 = vmax.f32 %v1659, 0.0
        %v2166 = vmax.f32 %v1664, 0.0
        %v2167 = vpack.c.bf16 %v2165, %v2164
        %v2168 = vpack.c.bf16 %v2166, %v2166
        %v2169 = vld [vmem:[#allocation2 + $0x480] sm:$0xf]
        %v2170 = vld [vmem:[#allocation2 + $0x484] sm:$0xf]
        %v2171 = vld [vmem:[#allocation2 + $0x488] sm:$0xf]
        %v2172 = vld [vmem:[#allocation2 + $0x48c] sm:$0xf]
        %v2173 = vld [vmem:[#allocation2 + $0x490] sm:$0xf]
        %v2174 = vld [vmem:[#allocation2 + $0x494] sm:$0xf]
        %v2175 = vld [vmem:[#allocation2 + $0x498] sm:$0xf]
        %v2176 = vld [vmem:[#allocation2 + $0x49c] sm:$0xf]
        %v2177 = vld [vmem:[#allocation2 + $0x4a0] sm:$0xf]
        %v2178 = vld [vmem:[#allocation2 + $0x4a4] sm:$0xf]
        %v2179 = vld [vmem:[#allocation2 + $0x4a8] sm:$0xf]
        %v2180 = vld [vmem:[#allocation2 + $0x4ac] sm:$0xf]
        %v2181 = vld [vmem:[#allocation2 + $0x4b0] sm:$0xf]
        %v2182 = vld [vmem:[#allocation2 + $0x4b4] sm:$0xf]
        %v2183 = vld [vmem:[#allocation2 + $0x4b8] sm:$0xf]
        %v2184 = vld [vmem:[#allocation2 + $0x4bc] sm:$0xf]
        %v2201 = vunpack.c.l.b16 %v2169
        %v2202 = vunpack.c.l.b16 %v2170
        %v2203 = vunpack.c.l.b16 %v2171
        %v2204 = vunpack.c.l.b16 %v2172
        %v2205 = vunpack.c.l.b16 %v2173
        %v2206 = vunpack.c.l.b16 %v2174
        %v2207 = vunpack.c.l.b16 %v2175
        %v2208 = vunpack.c.l.b16 %v2176
        %v2209 = vunpack.c.l.b16 %v2177
        %v2210 = vunpack.c.l.b16 %v2178
        %v2211 = vunpack.c.l.b16 %v2179
        %v2212 = vunpack.c.l.b16 %v2180
        %v2213 = vunpack.c.l.b16 %v2181
        %v2214 = vunpack.c.l.b16 %v2182
        %v2215 = vunpack.c.l.b16 %v2183
        %v2216 = vunpack.c.l.b16 %v2184
        %v2217 = vpack.c.b16 %v2202, %v2201
        %v2218 = vpack.c.b16 %v2204, %v2203
        %v2219 = vpack.c.b16 %v2206, %v2205
        %v2220 = vpack.c.b16 %v2208, %v2207
        %v2221 = vpack.c.b16 %v2210, %v2209
        %v2222 = vpack.c.b16 %v2212, %v2211
        %v2223 = vpack.c.b16 %v2214, %v2213
        %v2224 = vpack.c.b16 %v2216, %v2215
        %2233 = vmatprep.subr.bf16.mxu0 0
        %2234 = vmatpush1.bf16.msra.mxu0 %v2217
        %2235 = vmatprep.subr.bf16.mxu0 0
        %2236 = vmatpush1.bf16.msra.mxu0 %v2218
        %2237 = vmatprep.subr.bf16.mxu0 0
        %2238 = vmatpush1.bf16.msra.mxu0 %v2219
        %2239 = vmatprep.subr.bf16.mxu0 0
        %2240 = vmatpush1.bf16.msra.mxu0 %v2220
        %2241 = vmatprep.subr.bf16.mxu0 0
        %2242 = vmatpush1.bf16.msra.mxu0 %v2221
        %2243 = vmatprep.subr.bf16.mxu0 0
        %2244 = vmatpush1.bf16.msra.mxu0 %v2222
        %2245 = vmatprep.subr.bf16.mxu0 0
        %2246 = vmatpush1.bf16.msra.mxu0 %v2223
        %2247 = vmatprep.subr.bf16.mxu0 0
        %2248 = vmatpush1.bf16.msra.mxu0 %v2224
        %2249 = vmatprep.subr.bf16.mxu0 0
        %2250 = vmatpush1.bf16.msra.mxu0 0
        %2251 = vmatprep.subr.bf16.mxu0 0
        %2252 = vmatpush1.bf16.msra.mxu0 0
        %2253 = vmatprep.subr.bf16.mxu0 0
        %2254 = vmatpush1.bf16.msra.mxu0 0
        %2255 = vmatprep.subr.bf16.mxu0 0
        %2256 = vmatpush1.bf16.msra.mxu0 0
        %2257 = vmatprep.subr.bf16.mxu0 0
        %2258 = vmatpush1.bf16.msra.mxu0 0
        %2259 = vmatprep.subr.bf16.mxu0 0
        %2260 = vmatpush1.bf16.msra.mxu0 0
        %2261 = vmatprep.subr.bf16.mxu0 0
        %2262 = vmatpush1.bf16.msra.mxu0 0
        %2263 = vmatprep.subr.bf16.mxu0 0
        %2264 = vmatpush1.bf16.msra.mxu0 0
        %2265 = vmatprep.mubr.bf16.mxu0 0
        %2266 = vmatmul.mubr.bf16.gmra.mrb[0].mxu0 %v2167
        %v2267 = vpop.f32.mrb[0].mxu0
        %v2268 = vadd.f32 %v2161, %v2267
        %v2269 = vpop.f32.mrb[0].mxu0
        %v2270 = vpop.f32.mrb[0].mxu0
        %v2271 = vadd.f32 %v2162, %v2270
        %v2272 = vpop.f32.mrb[0].mxu0
        %2273 = vmatprep.mubr.bf16.mxu0 0
        %2274 = vmatmul.mubr.bf16.gmra.mrb[0].mxu0 %v2168
        %v2275 = vpop.f32.mrb[0].mxu0
        %v2276 = vadd.f32 %v2163, %v2275
        %v2277 = vpop.f32.mrb[0].mxu0
        %v2278 = vpop.f32.mrb[0].mxu0
        %v2279 = vpop.f32.mrb[0].mxu0
        %2280 = vdwg.mxu0
        %v2281 = vpack.c.bf16 %v2162, %v2161
        %v2282 = vpack.c.bf16 %v2163, %v2163
        %v2283 = vpack.c.bf16 %v2271, %v2268
        %v2284 = vpack.c.bf16 %v2276, %v2276
        %v2285 = vld [vmem:[#allocation2 + $0x4c0] sm:$0xf]
        %v2286 = vld [vmem:[#allocation2 + $0x4c4] sm:$0xf]
        %v2287 = vld [vmem:[#allocation2 + $0x4c8] sm:$0xf]
        %v2288 = vld [vmem:[#allocation2 + $0x4cc] sm:$0xf]
        %v2289 = vld [vmem:[#allocation2 + $0x4d0] sm:$0xf]
        %v2290 = vld [vmem:[#allocation2 + $0x4d4] sm:$0xf]
        %v2291 = vld [vmem:[#allocation2 + $0x4d8] sm:$0xf]
        %v2292 = vld [vmem:[#allocation2 + $0x4dc] sm:$0xf]
        %v2293 = vld [vmem:[#allocation2 + $0x4e0] sm:$0xf]
        %v2294 = vld [vmem:[#allocation2 + $0x4e4] sm:$0xf]
        %v2295 = vld [vmem:[#allocation2 + $0x4e8] sm:$0xf]
        %v2296 = vld [vmem:[#allocation2 + $0x4ec] sm:$0xf]
        %v2297 = vld [vmem:[#allocation2 + $0x4f0] sm:$0xf]
        %v2298 = vld [vmem:[#allocation2 + $0x4f4] sm:$0xf]
        %v2299 = vld [vmem:[#allocation2 + $0x4f8] sm:$0xf]
        %v2300 = vld [vmem:[#allocation2 + $0x4fc] sm:$0xf]
        %v2301 = vld [vmem:[#allocation2 + $0x500] sm:$0xf]
        %v2302 = vld [vmem:[#allocation2 + $0x504] sm:$0xf]
        %v2303 = vld [vmem:[#allocation2 + $0x508] sm:$0xf]
        %v2304 = vld [vmem:[#allocation2 + $0x50c] sm:$0xf]
        %v2305 = vld [vmem:[#allocation2 + $0x510] sm:$0xf]
        %v2306 = vld [vmem:[#allocation2 + $0x514] sm:$0xf]
        %v2307 = vld [vmem:[#allocation2 + $0x518] sm:$0xf]
        %v2308 = vld [vmem:[#allocation2 + $0x51c] sm:$0xf]
        %v2309 = vld [vmem:[#allocation2 + $0x520] sm:$0xf]
        %v2310 = vld [vmem:[#allocation2 + $0x524] sm:$0xf]
        %v2311 = vld [vmem:[#allocation2 + $0x528] sm:$0xf]
        %v2312 = vld [vmem:[#allocation2 + $0x52c] sm:$0xf]
        %v2313 = vld [vmem:[#allocation2 + $0x530] sm:$0xf]
        %v2314 = vld [vmem:[#allocation2 + $0x534] sm:$0xf]
        %v2315 = vld [vmem:[#allocation2 + $0x538] sm:$0xf]
        %v2316 = vld [vmem:[#allocation2 + $0x53c] sm:$0xf]
        %v2349 = vunpack.c.l.b16 %v2285
        %v2350 = vunpack.c.l.b16 %v2286
        %v2351 = vunpack.c.l.b16 %v2287
        %v2352 = vunpack.c.l.b16 %v2288
        %v2353 = vunpack.c.l.b16 %v2289
        %v2354 = vunpack.c.l.b16 %v2290
        %v2355 = vunpack.c.l.b16 %v2291
        %v2356 = vunpack.c.l.b16 %v2292
        %v2357 = vunpack.c.l.b16 %v2293
        %v2358 = vunpack.c.l.b16 %v2294
        %v2359 = vunpack.c.l.b16 %v2295
        %v2360 = vunpack.c.l.b16 %v2296
        %v2361 = vunpack.c.l.b16 %v2297
        %v2362 = vunpack.c.l.b16 %v2298
        %v2363 = vunpack.c.l.b16 %v2299
        %v2364 = vunpack.c.l.b16 %v2300
        %v2365 = vunpack.c.l.b16 %v2301
        %v2366 = vunpack.c.l.b16 %v2302
        %v2367 = vunpack.c.l.b16 %v2303
        %v2368 = vunpack.c.l.b16 %v2304
        %v2369 = vunpack.c.l.b16 %v2305
        %v2370 = vunpack.c.l.b16 %v2306
        %v2371 = vunpack.c.l.b16 %v2307
        %v2372 = vunpack.c.l.b16 %v2308
        %v2373 = vunpack.c.l.b16 %v2309
        %v2374 = vunpack.c.l.b16 %v2310
        %v2375 = vunpack.c.l.b16 %v2311
        %v2376 = vunpack.c.l.b16 %v2312
        %v2377 = vunpack.c.l.b16 %v2313
        %v2378 = vunpack.c.l.b16 %v2314
        %v2379 = vunpack.c.l.b16 %v2315
        %v2380 = vunpack.c.l.b16 %v2316
        %v2381 = vpack.c.b16 %v2350, %v2349
        %v2382 = vpack.c.b16 %v2352, %v2351
        %v2383 = vpack.c.b16 %v2354, %v2353
        %v2384 = vpack.c.b16 %v2356, %v2355
        %v2385 = vpack.c.b16 %v2358, %v2357
        %v2386 = vpack.c.b16 %v2360, %v2359
        %v2387 = vpack.c.b16 %v2362, %v2361
        %v2388 = vpack.c.b16 %v2364, %v2363
        %v2389 = vpack.c.b16 %v2366, %v2365
        %v2390 = vpack.c.b16 %v2368, %v2367
        %v2391 = vpack.c.b16 %v2370, %v2369
        %v2392 = vpack.c.b16 %v2372, %v2371
        %v2393 = vpack.c.b16 %v2374, %v2373
        %v2394 = vpack.c.b16 %v2376, %v2375
        %v2395 = vpack.c.b16 %v2378, %v2377
        %v2396 = vpack.c.b16 %v2380, %v2379
        %2413 = vmatprep.subr.bf16.mxu0 0
        %2414 = vmatpush1.bf16.msra.mxu0 %v2381
        %2415 = vmatprep.subr.bf16.mxu0 0
        %2416 = vmatpush1.bf16.msra.mxu0 %v2382
        %2417 = vmatprep.subr.bf16.mxu0 0
        %2418 = vmatpush1.bf16.msra.mxu0 %v2383
        %2419 = vmatprep.subr.bf16.mxu0 0
        %2420 = vmatpush1.bf16.msra.mxu0 %v2384
        %2421 = vmatprep.subr.bf16.mxu0 0
        %2422 = vmatpush1.bf16.msra.mxu0 %v2385
        %2423 = vmatprep.subr.bf16.mxu0 0
        %2424 = vmatpush1.bf16.msra.mxu0 %v2386
        %2425 = vmatprep.subr.bf16.mxu0 0
        %2426 = vmatpush1.bf16.msra.mxu0 %v2387
        %2427 = vmatprep.subr.bf16.mxu0 0
        %2428 = vmatpush1.bf16.msra.mxu0 %v2388
        %2429 = vmatprep.subr.bf16.mxu0 0
        %2430 = vmatpush1.bf16.msra.mxu0 %v2389
        %2431 = vmatprep.subr.bf16.mxu0 0
        %2432 = vmatpush1.bf16.msra.mxu0 %v2390
        %2433 = vmatprep.subr.bf16.mxu0 0
        %2434 = vmatpush1.bf16.msra.mxu0 %v2391
        %2435 = vmatprep.subr.bf16.mxu0 0
        %2436 = vmatpush1.bf16.msra.mxu0 %v2392
        %2437 = vmatprep.subr.bf16.mxu0 0
        %2438 = vmatpush1.bf16.msra.mxu0 %v2393
        %2439 = vmatprep.subr.bf16.mxu0 0
        %2440 = vmatpush1.bf16.msra.mxu0 %v2394
        %2441 = vmatprep.subr.bf16.mxu0 0
        %2442 = vmatpush1.bf16.msra.mxu0 %v2395
        %2443 = vmatprep.subr.bf16.mxu0 0
        %2444 = vmatpush1.bf16.msra.mxu0 %v2396
        %2445 = vmatprep.mubr.bf16.mxu0 %v2283
        %2446 = vmatmul.mubr.bf16.gmra.mrb[0].mxu0 %v2281
        %v2447 = vpop.f32.mrb[0].mxu0
        %v2448 = vadd.f32 0.0, %v2447
        %v2449 = vpop.f32.mrb[0].mxu0
        %v2450 = vpop.f32.mrb[0].mxu0
        %v2451 = vadd.f32 0.0, %v2450
        %v2452 = vpop.f32.mrb[0].mxu0
        %2453 = vmatprep.mubr.bf16.mxu0 %v2284
        %2454 = vmatmul.mubr.bf16.gmra.mrb[0].mxu0 %v2282
        %v2455 = vpop.f32.mrb[0].mxu0
        %v2456 = vadd.f32 0.0, %v2455
        %v2457 = vpop.f32.mrb[0].mxu0
        %v2458 = vpop.f32.mrb[0].mxu0
        %v2459 = vpop.f32.mrb[0].mxu0
        %2460 = vdwg.mxu0
        %v2461 = vsub.f32 0.0, %v2448
        %v2462 = vsub.f32 0.0, %v2451
        %v2463 = vsub.f32 0.0, %v2456
        %v2464 = vmul.f32 %v2461, 1.442695
        %v2465 = vpow.pop %v2464
        %v2466 = vmul.f32 %v2462, 1.442695
        %v2467 = vpow.pop %v2466
        %v2468 = vmul.f32 %v2463, 1.442695
        %v2469 = vpow.pop %v2468
        %v2470 = vadd.f32 %v2465, 1.0
        %v2471 = vadd.f32 %v2467, 1.0
        %v2472 = vadd.f32 %v2469, 1.0
        %v2473 = vrcp.pop %v2470
        %v2474 = vmul.f32 1.0, %v2473
        %v2475 = vrcp.pop %v2471
        %v2476 = vmul.f32 1.0, %v2475
        %v2477 = vrcp.pop %v2472
        %v2478 = vmul.f32 1.0, %v2477
        %2479 = vst [vmem:[%s187] sm:$0xff] %v2474
        %2480 = vst [vmem:[%s187 + $0x8] sm:$0xff] %v2476
        %2481 = vst [vmem:[%s187 + $0x10] sm:$0xff] %v2478
        %s2482 = smul.u32 3, %s15
        %p2483 = scmp.lt.s32.totalorder %s2482, 5
        %s2484 = scalar_select %p2483, %s2482, 5
        %s2485 = smul.addr %s2484, 8
        %s2486 = scalar_lea.vmem %s3, %s2485
        // Predicated region
        $region37: #{network_forward.1} parent=31 // pred_check
          %p2487 = pneg %p101
        $region38: #{network_forward.1} parent=31 // pred_check_branch
          %2489 = sbr.rel (%p2487) target = $region40
        $region39: #{network_forward.1} parent=31 // pred_region
          %s2490 = smul.u32 3, %s15
        $region40: #{network_forward.1} parent=31 // pred_fallthru
          _
      $region32: #{network_forward.1} parent=5 // pred_fallthru
        _
      %p2491 = scmp.le.s32.totalorder 2, %s10
      // Predicated region
      $region41: #{network_forward.1} parent=5 // pred_check
        %p2492 = pneg %p2491
      $region42: #{network_forward.1} parent=5 // pred_check_branch
        %2494 = sbr.rel (%p2492) target = $region44
      $region43: #{network_forward.1} parent=5 // pred_region
        %s2495 = ssub.s32 %s10, 2
        // Predicated region
        $region45: #{network_forward.1} parent=43 // pred_check
          %p2496 = pneg %p107
        $region46: #{network_forward.1} parent=43 // pred_check_branch
          %2498 = sbr.rel (%p2496) target = $region48
        $region47: #{network_forward.1} parent=43 // pred_region
          %s2499 = smul.u32 3, %s16
          %p2500 = scmp.lt.s32.totalorder %s2499, 5
          %s2501 = scalar_select %p2500, %s2499, 5
          %s2502 = smul.addr %s2501, 8
          %s2503 = scalar_lea.vmem %s3, %s2502
        $region48: #{network_forward.1} parent=43 // pred_fallthru
          _
      $region44: #{network_forward.1} parent=5 // pred_fallthru
        _
    $region6: #{network_forward.1} parent=1 // loop_footer
      %s14 = sadd.s32 1, %s10
    $region7: #{network_forward.1} parent=1 // loop_footer_branch
      %9 = sbr.rel target = $region3
    $region8: #{network_forward.1} parent=1 // loop_exit
      _
    %2504 = vsyncpa [#allocation3], 1
    %s2505 = scalar_lea.sflag [#allocation3], 1
    %2506 = vsyncpa %s2505, 1

</llo_original>
